<compile_context>
chip_gen: v7x
topology: tpu7x:2x2x1
jax: 0.10.0
libtpu: 0.0.40
codegen_flags: <defaults>
</compile_context>

<pallas_src>
import functools

import jax
import jax.numpy as jnp
from jax import lax
from jax.experimental import pallas as pl
from jax.experimental.pallas import tpu as pltpu
from jax.scipy.linalg import cho_factor, cho_solve


def _round_up(x, m):
    return (x + m - 1) // m * m


def _pick_c_tile(c, per_c_block_bytes, budget_bytes=6 * 1024 * 1024):
    """Largest channel tile TC with C % TC == 0 and (TC % 8 == 0 or TC == C)
    whose double-buffered input blocks stay under `budget_bytes`."""
    if c * per_c_block_bytes <= budget_bytes:
        return c                       # whole-C single block already fits
    if c % 8 != 0:
        return c                       # cannot tile cleanly; fall back
    best = 8
    tc = 8
    while tc <= c:
        if c % tc == 0 and tc * per_c_block_bytes <= budget_bytes:
            best = tc
        tc += 8
    return best


# ---------------------------------------------------------------------------
# Pallas kernel: sum-pool over HW + L2-normalize + both Gram matrices,
# accumulated over channel chunks.
#   km     = support_n @ support_n.T            [Ns, Ns]
#   compat = query_n   @ support_n.T            [Nq, Ns]   (query-major)
# ---------------------------------------------------------------------------
def _pool_gram_kernel(s_ref, q_ref, km_ref, compat_ref,
                      gram_acc, sq_col, ssq_row, *, nq):
    c = pl.program_id(0)

    @pl.when(c == 0)
    def _():
        gram_acc[...] = jnp.zeros_like(gram_acc)
        sq_col[...] = jnp.zeros_like(sq_col)
        ssq_row[...] = jnp.zeros_like(ssq_row)

    # Sum-pool over the spatial axis with an f32 accumulator (cast post-DMA,
    # no full-block f32 copy).  The 1/HW of adaptive_avg_pool2d is dropped —
    # the downstream L2 normalization cancels it exactly.
    s_pool = jnp.sum(s_ref[...], axis=-1, dtype=jnp.float32)       # [Ns, TC]
    q_pool = jnp.sum(q_ref[...], axis=-1, dtype=jnp.float32)       # [Nq, TC]

    stacked = jnp.concatenate([q_pool, s_pool], axis=0)            # [Nq+Ns, TC]

    # One MXU call for both partial Grams: contract the channel axis of both
    # operands (no explicit transpose of s_pool, single weight load).
    gram_acc[...] += lax.dot_general(
        stacked, s_pool, (((1,), (1,)), ((), ())),
        preferred_element_type=jnp.float32)                        # [Nq+Ns, Ns]

    # Squared-norm partial sums: as a column (row scaling of the Grams) and as
    # a row for the support set (column scaling) via a [1,TC] ones matmul —
    # avoids any in-kernel transpose.
    sq_col[...] += jnp.sum(stacked * stacked, axis=-1, keepdims=True)
    ssq_row[...] += lax.dot_general(
        jnp.ones((1, s_pool.shape[1]), jnp.float32), s_pool * s_pool,
        (((1,), (1,)), ((), ())), preferred_element_type=jnp.float32)

    @pl.when(c == pl.num_programs(0) - 1)
    def _():
        # F.normalize(p=2, eps=1e-12): x / max(||x||, eps)
        #   == x * rsqrt(max(||x||^2, eps^2))  (rsqrt -> EUP slot, no divide).
        # Sum-pooling shifts the magnitude at which the eps clamp triggers;
        # only relevant for pathologically near-zero pooled features.
        eps2 = jnp.float32(1e-24)
        inv_col = lax.rsqrt(jnp.maximum(sq_col[...], eps2))        # [Nq+Ns, 1]
        inv_row = lax.rsqrt(jnp.maximum(ssq_row[...], eps2))       # [1, Ns]
        normed = gram_acc[...] * inv_col * inv_row
        compat_ref[...] = normed[:nq, :]
        km_ref[...] = normed[nq:, :]


def _features_and_grams(support_nchw, query_nchw):
    ns, c, hs, ws = support_nchw.shape
    nq = query_nchw.shape[0]
    hw = hs * ws
    # Pure-metadata reshapes (no HBM rewrite, no dtype cast here).
    s3 = support_nchw.reshape(ns, c, hw)
    q3 = query_nchw.reshape(nq, c, hw)

    # Channel tile: keep (2 inputs x 2 pipeline buffers) of [N, TC, pad128(HW)]
    # well under default scoped VMEM (also fits v7x's 64 MiB physical VMEM).
    itemsize = jnp.dtype(support_nchw.dtype).itemsize
    per_c_bytes = 2 * 2 * (ns + nq) * _round_up(hw, 128) * itemsize
    tc = _pick_c_tile(c, per_c_bytes)
    num_blocks = c // tc

    kernel = functools.partial(_pool_gram_kernel, nq=nq)
    km, compat = pl.pallas_call(
        kernel,
        out_shape=(jax.ShapeDtypeStruct((ns, ns), jnp.float32),
                   jax.ShapeDtypeStruct((nq, ns), jnp.float32)),
        grid=(num_blocks,),
        in_specs=[pl.BlockSpec((ns, tc, hw), lambda i: (0, i, 0)),
                  pl.BlockSpec((nq, tc, hw), lambda i: (0, i, 0))],
        out_specs=(pl.BlockSpec((ns, ns), lambda i: (0, 0)),
                   pl.BlockSpec((nq, ns), lambda i: (0, 0))),
        scratch_shapes=[pltpu.VMEM((nq + ns, ns), jnp.float32),
                        pltpu.VMEM((nq + ns, 1), jnp.float32),
                        pltpu.VMEM((1, ns), jnp.float32)],
        compiler_params=pltpu.CompilerParams(
            dimension_semantics=("arbitrary",)),
    )(s3, q3)
    return km, compat


# ---------------------------------------------------------------------------
# QP solve (stand-in for qpth.QPFunction): Mehrotra predictor-corrector PDIPM,
# specialized to the Crammer-Singer SVM dual structure:
#   minimize 1/2 z^T Q z + p^T z   s.t.  z <= h  (G = I),   A z = 0
#   Q = kron(K, I_way) + I,   A = kron(I_ns, 1_way^T)
# G = I and the kron structure of A are exploited; the SPD condensed system
# H = Q + diag(lam/s) is Cholesky-factored ONCE per iteration (plus a small
# Schur complement on A) and reused for predictor + corrector solves.
# TODO(synk): qpth's float64 batched LU QPFunction has no clean Pallas
# equivalent; this f32 solver solves the same QP but iterates differ from
# qpth's, so logits may differ slightly from the reference.
# ---------------------------------------------------------------------------
def _solve_svm_qp(km, onehot, C_reg, n_support, n_way, max_iter=3):
    dtype = jnp.float32
    nz = n_support * n_way
    neq = n_support

    Q = jnp.kron(km, jnp.eye(n_way, dtype=dtype)) + jnp.eye(nz, dtype=dtype)
    p = -onehot.reshape(-1)
    h = (C_reg * onehot).reshape(-1)
    A = jnp.kron(jnp.eye(n_support, dtype=dtype),
                 jnp.ones((1, n_way), dtype=dtype))            # [neq, nz]
    jitter = jnp.asarray(1e-8, dtype)

    z0 = jnp.zeros((nz,), dtype)
    s0 = jnp.ones((nz,), dtype)
    lam0 = jnp.ones((nz,), dtype)
    nu0 = jnp.zeros((neq,), dtype)

    def max_step(v, dv):
        neg = dv < 0
        safe = jnp.where(neg, dv, -jnp.ones_like(dv))
        ratio = jnp.where(neg, -v / safe, jnp.full_like(v, jnp.inf))
        return jnp.minimum(jnp.asarray(1.0, dtype), jnp.min(ratio))

    def body(_, carry):
        z, s, lam, nu = carry
        # Residuals with G = I and A = kron(I_ns, 1^T_way):
        rx = Q @ z + p + lam + jnp.repeat(nu, n_way)
        rz = z + s - h
        ry = jnp.sum(z.reshape(n_support, n_way), axis=-1)
        mu = jnp.dot(s, lam) / nz

        d = lam / s
        # SPD condensed system; factor once per iteration, reuse twice.
        H = Q + jnp.diag(d + jitter)
        L = cho_factor(H, lower=True)
        Hinv_AT = cho_solve(L, A.T)                            # [nz, neq]
        S = A @ Hinv_AT + jitter * jnp.eye(neq, dtype=dtype)   # Schur complement
        LS = cho_factor(S, lower=True)

        def newton(rs_comp):
            r1 = -rx + (rs_comp / s - d * rz)
            v = cho_solve(L, r1)
            rhs = jnp.sum(v.reshape(n_support, n_way), axis=-1) + ry
            dnu = cho_solve(LS, rhs)
            dz = v - Hinv_AT @ dnu
            ds = -rz - dz
            dlam = -(rs_comp + lam * ds) / s
            return dz, ds, dlam, dnu

        # affine (predictor) step
        dz_a, ds_a, dlam_a, _ = newton(s * lam)
        alpha_a = jnp.minimum(max_step(s, ds_a), max_step(lam, dlam_a))
        mu_aff = jnp.dot(s + alpha_a * ds_a, lam + alpha_a * dlam_a) / nz
        sigma = (mu_aff / (mu + 1e-12)) ** 3
        # corrector + centering step (reuses the same factorizations)
        rs_comp = s * lam + ds_a * dlam_a - sigma * mu
        dz, ds, dlam, dnu = newton(rs_comp)
        alpha = 0.99 * jnp.minimum(max_step(s, ds), max_step(lam, dlam))
        return (z + alpha * dz, s + alpha * ds, lam + alpha * dlam, nu + alpha * dnu)

    z, _, _, _ = lax.fori_loop(0, max_iter, body, (z0, s0, lam0, nu0))
    return z


# ---------------------------------------------------------------------------
# MetaoptHead.forward equivalent (whole thing jitted; n_way/max_iter static)
# ---------------------------------------------------------------------------
@functools.partial(jax.jit, static_argnames=("n_way", "max_iter"))
def metaopt_head_forward(query_images, support_images, support_labels, n_way,
                         C_reg=0.1, max_iter=3):
    # 2-D feature inputs are handled by adding a trivial spatial axis.
    if support_images.ndim == 2:
        support_images = support_images[:, :, None, None]
        query_images = query_images[:, :, None, None]

    # Pallas: pooling + L2 normalize + Gram matrices (compat is [Nq, Ns]).
    km, compat = _features_and_grams(support_images, query_images)

    n_support = support_images.shape[0]
    onehot = jax.nn.one_hot(support_labels, n_way, dtype=jnp.float32)  # [ns, w]

    qp_sol = _solve_svm_qp(km, onehot, C_reg, n_support, n_way, max_iter=max_iter)
    qp_sol = qp_sol.reshape(n_support, n_way)

    # logits[q, w] = sum_s qp_sol[s, w] * compat[q, s] — tiny matmul; XLA fuses
    # it (a dedicated pallas_call here would be pure launch overhead).
    logits = jnp.dot(compat, qp_sol, preferred_element_type=jnp.float32)  # [Nq, W]
    return jnp.squeeze(logits)            # matches torch.squeeze in forward


if __name__ == "__main__":
    key = jax.random.PRNGKey(0)
    kq, ks = jax.random.split(key)

    n_way, n_shot, n_query_per = 3, 2, 2
    C, H, W = 4, 16, 16
    num_support = n_way * n_shot       # 6
    num_query = n_way * n_query_per    # 6

    support_images = jax.random.normal(ks, (num_support, C, H, W), jnp.float32)
    query_images = jax.random.normal(kq, (num_query, C, H, W), jnp.float32)
    support_labels = jnp.repeat(jnp.arange(n_way, dtype=jnp.int32), n_shot)

    logits = metaopt_head_forward(query_images, support_images, support_labels,
                                  n_way=n_way, max_iter=3)
    jax.block_until_ready(logits)
    assert logits.shape == (num_query, n_way)
    print("KERNEL_OK")
</pallas_src>

<mosaic_0001>
module attributes {stable_mosaic.version = 11 : i64} {
  func.func @_pool_gram_kernel(%arg0: i32, %arg1: memref<6x4x256xf32, #tpu.memory_space<vmem>>, %arg2: memref<6x4x256xf32, #tpu.memory_space<vmem>>, %arg3: memref<6x6xf32, #tpu.memory_space<vmem>>, %arg4: memref<6x6xf32, #tpu.memory_space<vmem>>, %arg5: memref<12x6xf32, #tpu.memory_space<vmem>>, %arg6: memref<12x1xf32, #tpu.memory_space<vmem>>, %arg7: memref<1x6xf32, #tpu.memory_space<vmem>>) attributes {dimension_semantics = [#tpu.dimension_semantics<arbitrary>], iteration_bounds = array<i64: 1>, scalar_prefetch = 0 : i64, scratch_operands = 3 : i64, tpu.core_type = #tpu.core_type<tc>, window_params = [{transform_indices = @transform_0, window_bounds = array<i64: 6, 4, 256>}, {transform_indices = @transform_1, window_bounds = array<i64: 6, 4, 256>}, {pipeline_mode = #tpu.pipeline_mode<synchronous>, transform_indices = @transform_2, window_bounds = array<i64: 6, 6>}, {pipeline_mode = #tpu.pipeline_mode<synchronous>, transform_indices = @transform_3, window_bounds = array<i64: 6, 6>}]} {
    %c0_i32 = arith.constant 0 : i32
    %0 = arith.cmpi eq, %arg0, %c0_i32 : i32
    %1 = arith.extui %0 : i1 to i32
    %c0_i32_0 = arith.constant 0 : i32
    %2 = arith.cmpi ne, %1, %c0_i32_0 : i32
    scf.if %2 {
      %cst_25 = arith.constant 0.000000e+00 : f32
      %27 = vector.broadcast %cst_25 : f32 to vector<12x6xf32>
      %c0_26 = arith.constant 0 : index
      %c0_27 = arith.constant 0 : index
      %28 = vector.load %arg5[%c0_26, %c0_27] : memref<12x6xf32, #tpu.memory_space<vmem>>, vector<12x6xf32>
      tpu.vector_store %arg5[%c0_26, %c0_27], %27 {strides = array<i32>} : memref<12x6xf32, #tpu.memory_space<vmem>>, vector<12x6xf32>,
      %cst_28 = arith.constant 0.000000e+00 : f32
      %29 = vector.broadcast %cst_28 : f32 to vector<12x1xf32>
      %c0_29 = arith.constant 0 : index
      %c0_30 = arith.constant 0 : index
      %30 = vector.load %arg6[%c0_29, %c0_30] : memref<12x1xf32, #tpu.memory_space<vmem>>, vector<12x1xf32>
      tpu.vector_store %arg6[%c0_29, %c0_30], %29 {strides = array<i32>} : memref<12x1xf32, #tpu.memory_space<vmem>>, vector<12x1xf32>,
      %cst_31 = arith.constant 0.000000e+00 : f32
      %31 = vector.broadcast %cst_31 : f32 to vector<1x6xf32>
      %c0_32 = arith.constant 0 : index
      %c0_33 = arith.constant 0 : index
      %32 = vector.load %arg7[%c0_32, %c0_33] : memref<1x6xf32, #tpu.memory_space<vmem>>, vector<1x6xf32>
      tpu.vector_store %arg7[%c0_32, %c0_33], %31 {strides = array<i32>} : memref<1x6xf32, #tpu.memory_space<vmem>>, vector<1x6xf32>,
    } else {
    }
    %c0 = arith.constant 0 : index
    %c0_1 = arith.constant 0 : index
    %c0_2 = arith.constant 0 : index
    %3 = vector.load %arg1[%c0, %c0_1, %c0_2] : memref<6x4x256xf32, #tpu.memory_space<vmem>>, vector<6x4x256xf32>
    %cst = arith.constant dense<0.000000e+00> : vector<6x4xf32>
    %4 = vector.multi_reduction <add>, %3, %cst [2] : vector<6x4x256xf32> to vector<6x4xf32>
    %c0_3 = arith.constant 0 : index
    %c0_4 = arith.constant 0 : index
    %c0_5 = arith.constant 0 : index
    %5 = vector.load %arg2[%c0_3, %c0_4, %c0_5] : memref<6x4x256xf32, #tpu.memory_space<vmem>>, vector<6x4x256xf32>
    %cst_6 = arith.constant dense<0.000000e+00> : vector<6x4xf32>
    %6 = vector.multi_reduction <add>, %5, %cst_6 [2] : vector<6x4x256xf32> to vector<6x4xf32>
    %7 = tpu.concatenate %6, %4 in 0 : vector<6x4xf32>, vector<6x4xf32> -> vector<12x4xf32>
    %c0_7 = arith.constant 0 : index
    %c0_8 = arith.constant 0 : index
    %8 = vector.load %arg5[%c0_7, %c0_8] : memref<12x6xf32, #tpu.memory_space<vmem>>, vector<12x6xf32>
    %cst_9 = arith.constant dense<0.000000e+00> : vector<12x6xf32>
    %9 = tpu.matmul %7, %4, %cst_9 {dimension_numbers = #tpu.dot_dimension_numbers<[1], [1], [0], [0], [0, 0, 1, 0], [], []>} : vector<12x4xf32>, vector<6x4xf32>, vector<12x6xf32> -> vector<12x6xf32>
    %10 = arith.addf %8, %9 : vector<12x6xf32>
    %c0_10 = arith.constant 0 : index
    %c0_11 = arith.constant 0 : index
    %11 = vector.load %arg5[%c0_10, %c0_11] : memref<12x6xf32, #tpu.memory_space<vmem>>, vector<12x6xf32>
    tpu.vector_store %arg5[%c0_10, %c0_11], %10 {strides = array<i32>} : memref<12x6xf32, #tpu.memory_space<vmem>>, vector<12x6xf32>,
    %c0_12 = arith.constant 0 : index
    %c0_13 = arith.constant 0 : index
    %12 = vector.load %arg6[%c0_12, %c0_13] : memref<12x1xf32, #tpu.memory_space<vmem>>, vector<12x1xf32>
    %13 = arith.mulf %7, %7 : vector<12x4xf32>
    %cst_14 = arith.constant dense<0.000000e+00> : vector<12xf32>
    %14 = vector.multi_reduction <add>, %13, %cst_14 [1] : vector<12x4xf32> to vector<12xf32>
    %15 = vector.shape_cast %14 : vector<12xf32> to vector<12x1xf32>
    %16 = arith.addf %12, %15 : vector<12x1xf32>
    %c0_15 = arith.constant 0 : index
    %c0_16 = arith.constant 0 : index
    %17 = vector.load %arg6[%c0_15, %c0_16] : memref<12x1xf32, #tpu.memory_space<vmem>>, vector<12x1xf32>
    tpu.vector_store %arg6[%c0_15, %c0_16], %16 {strides = array<i32>} : memref<12x1xf32, #tpu.memory_space<vmem>>, vector<12x1xf32>,
    %c0_17 = arith.constant 0 : index
    %c0_18 = arith.constant 0 : index
    %18 = vector.load %arg7[%c0_17, %c0_18] : memref<1x6xf32, #tpu.memory_space<vmem>>, vector<1x6xf32>
    %cst_19 = arith.constant 1.000000e+00 : f32
    %19 = vector.broadcast %cst_19 : f32 to vector<1x4xf32>
    %20 = arith.mulf %4, %4 : vector<6x4xf32>
    %cst_20 = arith.constant dense<0.000000e+00> : vector<1x6xf32>
    %21 = tpu.matmul %19, %20, %cst_20 {dimension_numbers = #tpu.dot_dimension_numbers<[1], [1], [0], [0], [0, 0, 1, 0], [], []>} : vector<1x4xf32>, vector<6x4xf32>, vector<1x6xf32> -> vector<1x6xf32>
    %22 = arith.addf %18, %21 : vector<1x6xf32>
    %c0_21 = arith.constant 0 : index
    %c0_22 = arith.constant 0 : index
    %23 = vector.load %arg7[%c0_21, %c0_22] : memref<1x6xf32, #tpu.memory_space<vmem>>, vector<1x6xf32>
    tpu.vector_store %arg7[%c0_21, %c0_22], %22 {strides = array<i32>} : memref<1x6xf32, #tpu.memory_space<vmem>>, vector<1x6xf32>,
    %c0_i32_23 = arith.constant 0 : i32
    %24 = arith.cmpi eq, %arg0, %c0_i32_23 : i32
    %25 = arith.extui %24 : i1 to i32
    %c0_i32_24 = arith.constant 0 : i32
    %26 = arith.cmpi ne, %25, %c0_i32_24 : i32
    scf.if %26 {
      %c0_25 = arith.constant 0 : index
      %c0_26 = arith.constant 0 : index
      %27 = vector.load %arg6[%c0_25, %c0_26] : memref<12x1xf32, #tpu.memory_space<vmem>>, vector<12x1xf32>
      %cst_27 = arith.constant 1.000000e-24 : f32
      %28 = vector.broadcast %cst_27 : f32 to vector<12x1xf32>
      %29 = arith.maximumf %27, %28 : vector<12x1xf32>
      %30 = math.rsqrt %29 : vector<12x1xf32>
      %c0_28 = arith.constant 0 : index
      %c0_29 = arith.constant 0 : index
      %31 = vector.load %arg7[%c0_28, %c0_29] : memref<1x6xf32, #tpu.memory_space<vmem>>, vector<1x6xf32>
      %cst_30 = arith.constant 1.000000e-24 : f32
      %32 = vector.broadcast %cst_30 : f32 to vector<1x6xf32>
      %33 = arith.maximumf %31, %32 : vector<1x6xf32>
      %34 = math.rsqrt %33 : vector<1x6xf32>
      %c0_31 = arith.constant 0 : index
      %c0_32 = arith.constant 0 : index
      %35 = vector.load %arg5[%c0_31, %c0_32] : memref<12x6xf32, #tpu.memory_space<vmem>>, vector<12x6xf32>
      %36 = vector.broadcast %30 : vector<12x1xf32> to vector<12x6xf32>
      %37 = arith.mulf %35, %36 : vector<12x6xf32>
      %38 = vector.broadcast %34 : vector<1x6xf32> to vector<12x6xf32>
      %39 = arith.mulf %37, %38 : vector<12x6xf32>
      %40 = vector.extract_strided_slice %39 {offsets = [0, 0], sizes = [6, 6], strides = [1, 1]} : vector<12x6xf32> to vector<6x6xf32>
      %c0_33 = arith.constant 0 : index
      %c0_34 = arith.constant 0 : index
      %41 = vector.load %arg4[%c0_33, %c0_34] : memref<6x6xf32, #tpu.memory_space<vmem>>, vector<6x6xf32>
      tpu.vector_store %arg4[%c0_33, %c0_34], %40 {strides = array<i32>} : memref<6x6xf32, #tpu.memory_space<vmem>>, vector<6x6xf32>,
      %42 = vector.extract_strided_slice %39 {offsets = [6, 0], sizes = [6, 6], strides = [1, 1]} : vector<12x6xf32> to vector<6x6xf32>
      %c0_35 = arith.constant 0 : index
      %c0_36 = arith.constant 0 : index
      %43 = vector.load %arg3[%c0_35, %c0_36] : memref<6x6xf32, #tpu.memory_space<vmem>>, vector<6x6xf32>
      tpu.vector_store %arg3[%c0_35, %c0_36], %42 {strides = array<i32>} : memref<6x6xf32, #tpu.memory_space<vmem>>, vector<6x6xf32>,
    } else {
    }
    return
  }
  func.func @transform_0(%arg0: i32) -> (i32, i32, i32) {
    %c0_i32 = arith.constant 0 : i32
    %c0_i32_0 = arith.constant 0 : i32
    %c0_i32_1 = arith.constant 0 : i32
    return %c0_i32, %arg0, %c0_i32_0 : i32, i32, i32
  }
  func.func @transform_1(%arg0: i32) -> (i32, i32, i32) {
    %c0_i32 = arith.constant 0 : i32
    %c0_i32_0 = arith.constant 0 : i32
    %c0_i32_1 = arith.constant 0 : i32
    return %c0_i32, %arg0, %c0_i32_0 : i32, i32, i32
  }
  func.func @transform_2(%arg0: i32) -> (i32, i32) {
    %c0_i32 = arith.constant 0 : i32
    %c0_i32_0 = arith.constant 0 : i32
    %c0_i32_1 = arith.constant 0 : i32
    return %c0_i32, %c0_i32_0 : i32, i32
  }
  func.func @transform_3(%arg0: i32) -> (i32, i32) {
    %c0_i32 = arith.constant 0 : i32
    %c0_i32_0 = arith.constant 0 : i32
    %c0_i32_1 = arith.constant 0 : i32
    return %c0_i32, %c0_i32_0 : i32, i32
  }
}

</mosaic_0001>

<llo_original>
// kernel: custom-call.26
$region0: #{custom-call.26}
  %s0 = inlined_call_operand.vmem [shape: f32[18], index: 0, kind: output, shape index: {}]

// kernel: custom-call.29
$region0: #{custom-call.29}
  %s0 = inlined_call_operand.vmem [shape: f32[6], index: 0, kind: output, shape index: {}]

// kernel: custom-call.47
$region0: #{custom-call.47}
  %s0 = inlined_call_operand.vmem [shape: f32[18,18], index: 0, kind: input, shape index: {}]
  %s1 = inlined_call_operand.vmem [shape: f32[18,18], index: 1, kind: output, shape index: {}]
  $region1: #{custom-call.47} parent=0
    #allocation0 [shape = 'u8[12288]{0}', space=vmem, size = 0x3000, scoped, tag = 'operand span for operand 0']
    #allocation1 [shape = 'u8[12288]{0}', space=vmem, size = 0x3000, scoped, tag = 'operand span for operand 1']
    // Predicated region
    $region2: #{custom-call.47} parent=1 // pred_check
      _
    $region3: #{custom-call.47} parent=1 // pred_check_branch
      %3 = sbr.rel (0) target = $region5
    $region4: #{custom-call.47} parent=1 // pred_region
      // Predicated region
      $region6: #{custom-call.47} parent=4 // pred_check
        _
      $region7: #{custom-call.47} parent=4 // pred_check_branch
        %5 = sbr.rel (0) target = $region9
      $region8: #{custom-call.47} parent=4 // pred_region
        // Predicated region
        $region21: #{custom-call.47} parent=8 // pred_check
          _
        $region22: #{custom-call.47} parent=8 // pred_check_branch
          %24 = sbr.rel (0) target = $region24
        $region23: #{custom-call.47} parent=8 // pred_region
          loop: start=0, step=1, limit=1
          $region25: #{custom-call.47} parent=23 // loop_pre_header
            _
          $region26: #{custom-call.47} parent=23 // loop_header
            %s26 = sphi 0, %s30
            %p27 = scmp.ge.s32.totalorder %s26, 1
            %s31 = sphi %s0, %s0
            %s32 = sphi [#allocation0], [#allocation0]
          $region27: #{custom-call.47} parent=23 // loop_header_branch
            %29 = sbr.rel (%p27) target = $region31
          $region28: #{custom-call.47} parent=23 // loop_body
            %v33 = vld [vmem:[%s31] sm:$0xff]
            %34 = vst [vmem:[%s32] sm:$0xff] %v33
            %v35 = vld [vmem:[%s31 + $0x8] sm:$0xff]
            %36 = vst [vmem:[%s32 + $0x8] sm:$0xff] %v35
            %v37 = vld [vmem:[%s31 + $0x10] sm:$0xff]
            %38 = vst [vmem:[%s32 + $0x10] sm:$0xff] %v37
          $region29: #{custom-call.47} parent=23 // loop_footer
            %s30 = sadd.s32 1, %s26
          $region30: #{custom-call.47} parent=23 // loop_footer_branch
            %25 = sbr.rel target = $region26
          $region31: #{custom-call.47} parent=23 // loop_exit
            _
        $region24: #{custom-call.47} parent=8 // pred_fallthru
          _
        // Predicated region
        $region32: #{custom-call.47} parent=8 // pred_check
          _
        $region33: #{custom-call.47} parent=8 // pred_check_branch
          %40 = sbr.rel target = $region35
        $region34: #{custom-call.47} parent=8 // pred_region
          _
        $region35: #{custom-call.47} parent=8 // pred_fallthru
          _
      $region9: #{custom-call.47} parent=4 // pred_fallthru
        _
      // Predicated region
      $region10: #{custom-call.47} parent=4 // pred_check
        _
      $region11: #{custom-call.47} parent=4 // pred_check_branch
        %7 = sbr.rel target = $region13
      $region12: #{custom-call.47} parent=4 // pred_region
        loop: start=0, step=1, limit=1
        $region14: #{custom-call.47} parent=12 // loop_pre_header
          _
        $region15: #{custom-call.47} parent=12 // loop_header
          %s10 = sphi 0, %s14
          %p11 = scmp.ge.s32.totalorder %s10, 1
          %s15 = sphi %s0, %s0
          %s16 = sphi [#allocation0], [#allocation0]
        $region16: #{custom-call.47} parent=12 // loop_header_branch
          %13 = sbr.rel (%p11) target = $region20
        $region17: #{custom-call.47} parent=12 // loop_body
          %v17 = vld [vmem:[%s15] sm:$0xff]
          %18 = vst [vmem:[%s16] sm:$0xff] %v17
          %v19 = vld [vmem:[%s15 + $0x8] sm:$0xff]
          %20 = vst [vmem:[%s16 + $0x8] sm:$0xff] %v19
          %v21 = vld [vmem:[%s15 + $0x10] sm:$0xff]
          %22 = vst [vmem:[%s16 + $0x10] sm:$0xff] %v21
        $region18: #{custom-call.47} parent=12 // loop_footer
          %s14 = sadd.s32 1, %s10
        $region19: #{custom-call.47} parent=12 // loop_footer_branch
          %9 = sbr.rel target = $region15
        $region20: #{custom-call.47} parent=12 // loop_exit
          _
      $region13: #{custom-call.47} parent=4 // pred_fallthru
        _
    $region5: #{custom-call.47} parent=1 // pred_fallthru
      _
    %41 = vnop
    %42 = vst [vmem:[#allocation1] sm:$0xff] 0.0
    %s43 = scalar_lea.vmem [#allocation1], 8
    %44 = vst [vmem:[%s43] sm:$0xff] 0.0
    %s45 = scalar_lea.vmem [#allocation1], 16
    %46 = vst [vmem:[%s45] sm:$0xff] 0.0
    %vm47 = vcmask 7168
    %v48 = vld [vmem:[#allocation1] ss:$0 sm:$0xff]
    %v49 = vld [vmem:[#allocation0] ss:$0 sm:$0xff]
    %v50 = vmul.f32 %v48, %v48
    %51 = vadd.xlane.f32.xlu0 %v50
    %v52 = vpop.xlane.xlu0 %51
    %v53 = vsub.f32 %v49, %v52
    %v54 = vrsqrt.pop %v53
    %v55 = vld [vmem:[#allocation0] sm:$0xff]
    %v56 = vld [vmem:[#allocation1] sm:$0xff]
    %v57 = vmul.f32 %v56, %v48
    %58 = vadd.xlane.f32.xlu0 %v57
    %v59 = vpop.xlane.xlu0 %58
    %v60 = vsub.f32 %v55, %v59
    %v61 = vmul.f32 %v60, %v54
    %v62 = vsel %vm47, %v61, 0.0
    %v63 = vadd.f32 %v56, %v62
    %64 = vst [vmem:[#allocation1] sm:$0xff] %v63
    %s65 = scalar_lea.vmem [#allocation0], 8
    %v66 = vld [vmem:[%s65] sm:$0xff]
    %s67 = scalar_lea.vmem [#allocation1], 8
    %v68 = vld [vmem:[%s67] sm:$0xff]
    %v69 = vmul.f32 %v68, %v48
    %70 = vadd.xlane.f32.xlu0 %v69
    %v71 = vpop.xlane.xlu0 %70
    %v72 = vsub.f32 %v66, %v71
    %v73 = vmul.f32 %v72, %v54
    %v74 = vsel %vm47, %v73, 0.0
    %v75 = vadd.f32 %v68, %v74
    %s76 = scalar_lea.vmem [#allocation1], 8
    %77 = vst [vmem:[%s76] sm:$0xff] %v75
    %s78 = scalar_lea.vmem [#allocation0], 16
    %v79 = vld [vmem:[%s78] sm:$0xff]
    %s80 = scalar_lea.vmem [#allocation1], 16
    %v81 = vld [vmem:[%s80] sm:$0xff]
    %v82 = vmul.f32 %v81, %v48
    %83 = vadd.xlane.f32.xlu0 %v82
    %v84 = vpop.xlane.xlu0 %83
    %v85 = vsub.f32 %v79, %v84
    %v86 = vmul.f32 %v85, %v54
    %v87 = vsel %vm47, %v86, 0.0
    %v88 = vadd.f32 %v81, %v87
    %s89 = scalar_lea.vmem [#allocation1], 16
    %90 = vst [vmem:[%s89] sm:$0xff] %v88
    %vm91 = vcmask 15368
    %s92 = scalar_lea.vmem [#allocation1], 1
    %v93 = vld [vmem:[%s92] ss:$0 sm:$0xff]
    %s94 = scalar_lea.vmem [#allocation0], 1
    %v95 = vld [vmem:[%s94] ss:$0 sm:$0xff]
    %v96 = vmul.f32 %v93, %v93
    %97 = vadd.xlane.f32.xlu0 %v96
    %v98 = vpop.xlane.xlu0 %97
    %v99 = vsub.f32 %v95, %v98
    %v100 = vrsqrt.pop %v99
    %v101 = vld [vmem:[#allocation0] sm:$0xff]
    %v102 = vld [vmem:[#allocation1] sm:$0xff]
    %v103 = vmul.f32 %v102, %v93
    %104 = vadd.xlane.f32.xlu0 %v103
    %v105 = vpop.xlane.xlu0 %104
    %v106 = vsub.f32 %v101, %v105
    %v107 = vmul.f32 %v106, %v100
    %vm108 = vcmask 1047553
    %vm109 = vmand %vm91, %vm108
    %v110 = vsel %vm109, %v107, 0.0
    %v111 = vadd.f32 %v102, %v110
    %112 = vst [vmem:[#allocation1] sm:$0xff] %v111
    %s113 = scalar_lea.vmem [#allocation0], 8
    %v114 = vld [vmem:[%s113] sm:$0xff]
    %s115 = scalar_lea.vmem [#allocation1], 8
    %v116 = vld [vmem:[%s115] sm:$0xff]
    %v117 = vmul.f32 %v116, %v93
    %118 = vadd.xlane.f32.xlu0 %v117
    %v119 = vpop.xlane.xlu0 %118
    %v120 = vsub.f32 %v114, %v119
    %v121 = vmul.f32 %v120, %v100
    %v122 = vsel %vm91, %v121, 0.0
    %v123 = vadd.f32 %v116, %v122
    %s124 = scalar_lea.vmem [#allocation1], 8
    %125 = vst [vmem:[%s124] sm:$0xff] %v123
    %s126 = scalar_lea.vmem [#allocation0], 16
    %v127 = vld [vmem:[%s126] sm:$0xff]
    %s128 = scalar_lea.vmem [#allocation1], 16
    %v129 = vld [vmem:[%s128] sm:$0xff]
    %v130 = vmul.f32 %v129, %v93
    %131 = vadd.xlane.f32.xlu0 %v130
    %v132 = vpop.xlane.xlu0 %131
    %v133 = vsub.f32 %v127, %v132
    %v134 = vmul.f32 %v133, %v100
    %v135 = vsel %vm91, %v134, 0.0
    %v136 = vadd.f32 %v129, %v135
    %s137 = scalar_lea.vmem [#allocation1], 16
    %138 = vst [vmem:[%s137] sm:$0xff] %v136
    %vm139 = vcmask 23568
    %s140 = scalar_lea.vmem [#allocation1], 2
    %v141 = vld [vmem:[%s140] ss:$0 sm:$0xff]
    %s142 = scalar_lea.vmem [#allocation0], 2
    %v143 = vld [vmem:[%s142] ss:$0 sm:$0xff]
    %v144 = vmul.f32 %v141, %v141
    %145 = vadd.xlane.f32.xlu0 %v144
    %v146 = vpop.xlane.xlu0 %145
    %v147 = vsub.f32 %v143, %v146
    %v148 = vrsqrt.pop %v147
    %v149 = vld [vmem:[#allocation0] sm:$0xff]
    %v150 = vld [vmem:[#allocation1] sm:$0xff]
    %v151 = vmul.f32 %v150, %v141
    %152 = vadd.xlane.f32.xlu0 %v151
    %v153 = vpop.xlane.xlu0 %152
    %v154 = vsub.f32 %v149, %v153
    %v155 = vmul.f32 %v154, %v148
    %vm156 = vcmask 1047554
    %vm157 = vmand %vm139, %vm156
    %v158 = vsel %vm157, %v155, 0.0
    %v159 = vadd.f32 %v150, %v158
    %160 = vst [vmem:[#allocation1] sm:$0xff] %v159
    %s161 = scalar_lea.vmem [#allocation0], 8
    %v162 = vld [vmem:[%s161] sm:$0xff]
    %s163 = scalar_lea.vmem [#allocation1], 8
    %v164 = vld [vmem:[%s163] sm:$0xff]
    %v165 = vmul.f32 %v164, %v141
    %166 = vadd.xlane.f32.xlu0 %v165
    %v167 = vpop.xlane.xlu0 %166
    %v168 = vsub.f32 %v162, %v167
    %v169 = vmul.f32 %v168, %v148
    %v170 = vsel %vm139, %v169, 0.0
    %v171 = vadd.f32 %v164, %v170
    %s172 = scalar_lea.vmem [#allocation1], 8
    %173 = vst [vmem:[%s172] sm:$0xff] %v171
    %s174 = scalar_lea.vmem [#allocation0], 16
    %v175 = vld [vmem:[%s174] sm:$0xff]
    %s176 = scalar_lea.vmem [#allocation1], 16
    %v177 = vld [vmem:[%s176] sm:$0xff]
    %v178 = vmul.f32 %v177, %v141
    %179 = vadd.xlane.f32.xlu0 %v178
    %v180 = vpop.xlane.xlu0 %179
    %v181 = vsub.f32 %v175, %v180
    %v182 = vmul.f32 %v181, %v148
    %v183 = vsel %vm139, %v182, 0.0
    %v184 = vadd.f32 %v177, %v183
    %s185 = scalar_lea.vmem [#allocation1], 16
    %186 = vst [vmem:[%s185] sm:$0xff] %v184
    %vm187 = vcmask 31768
    %s188 = scalar_lea.vmem [#allocation1], 3
    %v189 = vld [vmem:[%s188] ss:$0 sm:$0xff]
    %s190 = scalar_lea.vmem [#allocation0], 3
    %v191 = vld [vmem:[%s190] ss:$0 sm:$0xff]
    %v192 = vmul.f32 %v189, %v189
    %193 = vadd.xlane.f32.xlu0 %v192
    %v194 = vpop.xlane.xlu0 %193
    %v195 = vsub.f32 %v191, %v194
    %v196 = vrsqrt.pop %v195
    %v197 = vld [vmem:[#allocation0] sm:$0xff]
    %v198 = vld [vmem:[#allocation1] sm:$0xff]
    %v199 = vmul.f32 %v198, %v189
    %200 = vadd.xlane.f32.xlu0 %v199
    %v201 = vpop.xlane.xlu0 %200
    %v202 = vsub.f32 %v197, %v201
    %v203 = vmul.f32 %v202, %v196
    %vm204 = vcmask 1047555
    %vm205 = vmand %vm187, %vm204
    %v206 = vsel %vm205, %v203, 0.0
    %v207 = vadd.f32 %v198, %v206
    %208 = vst [vmem:[#allocation1] sm:$0xff] %v207
    %s209 = scalar_lea.vmem [#allocation0], 8
    %v210 = vld [vmem:[%s209] sm:$0xff]
    %s211 = scalar_lea.vmem [#allocation1], 8
    %v212 = vld [vmem:[%s211] sm:$0xff]
    %v213 = vmul.f32 %v212, %v189
    %214 = vadd.xlane.f32.xlu0 %v213
    %v215 = vpop.xlane.xlu0 %214
    %v216 = vsub.f32 %v210, %v215
    %v217 = vmul.f32 %v216, %v196
    %v218 = vsel %vm187, %v217, 0.0
    %v219 = vadd.f32 %v212, %v218
    %s220 = scalar_lea.vmem [#allocation1], 8
    %221 = vst [vmem:[%s220] sm:$0xff] %v219
    %s222 = scalar_lea.vmem [#allocation0], 16
    %v223 = vld [vmem:[%s222] sm:$0xff]
    %s224 = scalar_lea.vmem [#allocation1], 16
    %v225 = vld [vmem:[%s224] sm:$0xff]
    %v226 = vmul.f32 %v225, %v189
    %227 = vadd.xlane.f32.xlu0 %v226
    %v228 = vpop.xlane.xlu0 %227
    %v229 = vsub.f32 %v223, %v228
    %v230 = vmul.f32 %v229, %v196
    %v231 = vsel %vm187, %v230, 0.0
    %v232 = vadd.f32 %v225, %v231
    %s233 = scalar_lea.vmem [#allocation1], 16
    %234 = vst [vmem:[%s233] sm:$0xff] %v232
    %vm235 = vcmask 39968
    %s236 = scalar_lea.vmem [#allocation1], 4
    %v237 = vld [vmem:[%s236] ss:$0 sm:$0xff]
    %s238 = scalar_lea.vmem [#allocation0], 4
    %v239 = vld [vmem:[%s238] ss:$0 sm:$0xff]
    %v240 = vmul.f32 %v237, %v237
    %241 = vadd.xlane.f32.xlu0 %v240
    %v242 = vpop.xlane.xlu0 %241
    %v243 = vsub.f32 %v239, %v242
    %v244 = vrsqrt.pop %v243
    %v245 = vld [vmem:[#allocation0] sm:$0xff]
    %v246 = vld [vmem:[#allocation1] sm:$0xff]
    %v247 = vmul.f32 %v246, %v237
    %248 = vadd.xlane.f32.xlu0 %v247
    %v249 = vpop.xlane.xlu0 %248
    %v250 = vsub.f32 %v245, %v249
    %v251 = vmul.f32 %v250, %v244
    %vm252 = vcmask 1047556
    %vm253 = vmand %vm235, %vm252
    %v254 = vsel %vm253, %v251, 0.0
    %v255 = vadd.f32 %v246, %v254
    %256 = vst [vmem:[#allocation1] sm:$0xff] %v255
    %s257 = scalar_lea.vmem [#allocation0], 8
    %v258 = vld [vmem:[%s257] sm:$0xff]
    %s259 = scalar_lea.vmem [#allocation1], 8
    %v260 = vld [vmem:[%s259] sm:$0xff]
    %v261 = vmul.f32 %v260, %v237
    %262 = vadd.xlane.f32.xlu0 %v261
    %v263 = vpop.xlane.xlu0 %262
    %v264 = vsub.f32 %v258, %v263
    %v265 = vmul.f32 %v264, %v244
    %v266 = vsel %vm235, %v265, 0.0
    %v267 = vadd.f32 %v260, %v266
    %s268 = scalar_lea.vmem [#allocation1], 8
    %269 = vst [vmem:[%s268] sm:$0xff] %v267
    %s270 = scalar_lea.vmem [#allocation0], 16
    %v271 = vld [vmem:[%s270] sm:$0xff]
    %s272 = scalar_lea.vmem [#allocation1], 16
    %v273 = vld [vmem:[%s272] sm:$0xff]
    %v274 = vmul.f32 %v273, %v237
    %275 = vadd.xlane.f32.xlu0 %v274
    %v276 = vpop.xlane.xlu0 %275
    %v277 = vsub.f32 %v271, %v276
    %v278 = vmul.f32 %v277, %v244
    %v279 = vsel %vm235, %v278, 0.0
    %v280 = vadd.f32 %v273, %v279
    %s281 = scalar_lea.vmem [#allocation1], 16
    %282 = vst [vmem:[%s281] sm:$0xff] %v280
    %vm283 = vcmask 48168
    %s284 = scalar_lea.vmem [#allocation1], 5
    %v285 = vld [vmem:[%s284] ss:$0 sm:$0xff]
    %s286 = scalar_lea.vmem [#allocation0], 5
    %v287 = vld [vmem:[%s286] ss:$0 sm:$0xff]
    %v288 = vmul.f32 %v285, %v285
    %289 = vadd.xlane.f32.xlu0 %v288
    %v290 = vpop.xlane.xlu0 %289
    %v291 = vsub.f32 %v287, %v290
    %v292 = vrsqrt.pop %v291
    %v293 = vld [vmem:[#allocation0] sm:$0xff]
    %v294 = vld [vmem:[#allocation1] sm:$0xff]
    %v295 = vmul.f32 %v294, %v285
    %296 = vadd.xlane.f32.xlu0 %v295
    %v297 = vpop.xlane.xlu0 %296
    %v298 = vsub.f32 %v293, %v297
    %v299 = vmul.f32 %v298, %v292
    %vm300 = vcmask 1047557
    %vm301 = vmand %vm283, %vm300
    %v302 = vsel %vm301, %v299, 0.0
    %v303 = vadd.f32 %v294, %v302
    %304 = vst [vmem:[#allocation1] sm:$0xff] %v303
    %s305 = scalar_lea.vmem [#allocation0], 8
    %v306 = vld [vmem:[%s305] sm:$0xff]
    %s307 = scalar_lea.vmem [#allocation1], 8
    %v308 = vld [vmem:[%s307] sm:$0xff]
    %v309 = vmul.f32 %v308, %v285
    %310 = vadd.xlane.f32.xlu0 %v309
    %v311 = vpop.xlane.xlu0 %310
    %v312 = vsub.f32 %v306, %v311
    %v313 = vmul.f32 %v312, %v292
    %v314 = vsel %vm283, %v313, 0.0
    %v315 = vadd.f32 %v308, %v314
    %s316 = scalar_lea.vmem [#allocation1], 8
    %317 = vst [vmem:[%s316] sm:$0xff] %v315
    %s318 = scalar_lea.vmem [#allocation0], 16
    %v319 = vld [vmem:[%s318] sm:$0xff]
    %s320 = scalar_lea.vmem [#allocation1], 16
    %v321 = vld [vmem:[%s320] sm:$0xff]
    %v322 = vmul.f32 %v321, %v285
    %323 = vadd.xlane.f32.xlu0 %v322
    %v324 = vpop.xlane.xlu0 %323
    %v325 = vsub.f32 %v319, %v324
    %v326 = vmul.f32 %v325, %v292
    %v327 = vsel %vm283, %v326, 0.0
    %v328 = vadd.f32 %v321, %v327
    %s329 = scalar_lea.vmem [#allocation1], 16
    %330 = vst [vmem:[%s329] sm:$0xff] %v328
    %vm331 = vcmask 56368
    %s332 = scalar_lea.vmem [#allocation1], 6
    %v333 = vld [vmem:[%s332] ss:$0 sm:$0xff]
    %s334 = scalar_lea.vmem [#allocation0], 6
    %v335 = vld [vmem:[%s334] ss:$0 sm:$0xff]
    %v336 = vmul.f32 %v333, %v333
    %337 = vadd.xlane.f32.xlu0 %v336
    %v338 = vpop.xlane.xlu0 %337
    %v339 = vsub.f32 %v335, %v338
    %v340 = vrsqrt.pop %v339
    %v341 = vld [vmem:[#allocation0] sm:$0xff]
    %v342 = vld [vmem:[#allocation1] sm:$0xff]
    %v343 = vmul.f32 %v342, %v333
    %344 = vadd.xlane.f32.xlu0 %v343
    %v345 = vpop.xlane.xlu0 %344
    %v346 = vsub.f32 %v341, %v345
    %v347 = vmul.f32 %v346, %v340
    %vm348 = vcmask 1047558
    %vm349 = vmand %vm331, %vm348
    %v350 = vsel %vm349, %v347, 0.0
    %v351 = vadd.f32 %v342, %v350
    %352 = vst [vmem:[#allocation1] sm:$0xff] %v351
    %s353 = scalar_lea.vmem [#allocation0], 8
    %v354 = vld [vmem:[%s353] sm:$0xff]
    %s355 = scalar_lea.vmem [#allocation1], 8
    %v356 = vld [vmem:[%s355] sm:$0xff]
    %v357 = vmul.f32 %v356, %v333
    %358 = vadd.xlane.f32.xlu0 %v357
    %v359 = vpop.xlane.xlu0 %358
    %v360 = vsub.f32 %v354, %v359
    %v361 = vmul.f32 %v360, %v340
    %v362 = vsel %vm331, %v361, 0.0
    %v363 = vadd.f32 %v356, %v362
    %s364 = scalar_lea.vmem [#allocation1], 8
    %365 = vst [vmem:[%s364] sm:$0xff] %v363
    %s366 = scalar_lea.vmem [#allocation0], 16
    %v367 = vld [vmem:[%s366] sm:$0xff]
    %s368 = scalar_lea.vmem [#allocation1], 16
    %v369 = vld [vmem:[%s368] sm:$0xff]
    %v370 = vmul.f32 %v369, %v333
    %371 = vadd.xlane.f32.xlu0 %v370
    %v372 = vpop.xlane.xlu0 %371
    %v373 = vsub.f32 %v367, %v372
    %v374 = vmul.f32 %v373, %v340
    %v375 = vsel %vm331, %v374, 0.0
    %v376 = vadd.f32 %v369, %v375
    %s377 = scalar_lea.vmem [#allocation1], 16
    %378 = vst [vmem:[%s377] sm:$0xff] %v376
    %vm379 = vcmask 64568
    %s380 = scalar_lea.vmem [#allocation1], 7
    %v381 = vld [vmem:[%s380] ss:$0 sm:$0xff]
    %s382 = scalar_lea.vmem [#allocation0], 7
    %v383 = vld [vmem:[%s382] ss:$0 sm:$0xff]
    %v384 = vmul.f32 %v381, %v381
    %385 = vadd.xlane.f32.xlu0 %v384
    %v386 = vpop.xlane.xlu0 %385
    %v387 = vsub.f32 %v383, %v386
    %v388 = vrsqrt.pop %v387
    %v389 = vld [vmem:[#allocation0] sm:$0xff]
    %v390 = vld [vmem:[#allocation1] sm:$0xff]
    %v391 = vmul.f32 %v390, %v381
    %392 = vadd.xlane.f32.xlu0 %v391
    %v393 = vpop.xlane.xlu0 %392
    %v394 = vsub.f32 %v389, %v393
    %v395 = vmul.f32 %v394, %v388
    %vm396 = vcmask 1047559
    %vm397 = vmand %vm379, %vm396
    %v398 = vsel %vm397, %v395, 0.0
    %v399 = vadd.f32 %v390, %v398
    %400 = vst [vmem:[#allocation1] sm:$0xff] %v399
    %s401 = scalar_lea.vmem [#allocation0], 8
    %v402 = vld [vmem:[%s401] sm:$0xff]
    %s403 = scalar_lea.vmem [#allocation1], 8
    %v404 = vld [vmem:[%s403] sm:$0xff]
    %v405 = vmul.f32 %v404, %v381
    %406 = vadd.xlane.f32.xlu0 %v405
    %v407 = vpop.xlane.xlu0 %406
    %v408 = vsub.f32 %v402, %v407
    %v409 = vmul.f32 %v408, %v388
    %v410 = vsel %vm379, %v409, 0.0
    %v411 = vadd.f32 %v404, %v410
    %s412 = scalar_lea.vmem [#allocation1], 8
    %413 = vst [vmem:[%s412] sm:$0xff] %v411
    %s414 = scalar_lea.vmem [#allocation0], 16
    %v415 = vld [vmem:[%s414] sm:$0xff]
    %s416 = scalar_lea.vmem [#allocation1], 16
    %v417 = vld [vmem:[%s416] sm:$0xff]
    %v418 = vmul.f32 %v417, %v381
    %419 = vadd.xlane.f32.xlu0 %v418
    %v420 = vpop.xlane.xlu0 %419
    %v421 = vsub.f32 %v415, %v420
    %v422 = vmul.f32 %v421, %v388
    %v423 = vsel %vm379, %v422, 0.0
    %v424 = vadd.f32 %v417, %v423
    %s425 = scalar_lea.vmem [#allocation1], 16
    %426 = vst [vmem:[%s425] sm:$0xff] %v424
    %vm427 = vcmask 72768
    %s428 = scalar_lea.vmem [#allocation1], 8
    %v429 = vld [vmem:[%s428] ss:$0 sm:$0xff]
    %s430 = scalar_lea.vmem [#allocation0], 8
    %v431 = vld [vmem:[%s430] ss:$0 sm:$0xff]
    %v432 = vmul.f32 %v429, %v429
    %433 = vadd.xlane.f32.xlu0 %v432
    %v434 = vpop.xlane.xlu0 %433
    %v435 = vsub.f32 %v431, %v434
    %v436 = vrsqrt.pop %v435
    %s437 = scalar_lea.vmem [#allocation0], 8
    %v438 = vld [vmem:[%s437] sm:$0xff]
    %s439 = scalar_lea.vmem [#allocation1], 8
    %v440 = vld [vmem:[%s439] sm:$0xff]
    %v441 = vmul.f32 %v440, %v429
    %442 = vadd.xlane.f32.xlu0 %v441
    %v443 = vpop.xlane.xlu0 %442
    %v444 = vsub.f32 %v438, %v443
    %v445 = vmul.f32 %v444, %v436
    %v446 = vsel %vm427, %v445, 0.0
    %v447 = vadd.f32 %v440, %v446
    %s448 = scalar_lea.vmem [#allocation1], 8
    %449 = vst [vmem:[%s448] sm:$0xff] %v447
    %s450 = scalar_lea.vmem [#allocation0], 16
    %v451 = vld [vmem:[%s450] sm:$0xff]
    %s452 = scalar_lea.vmem [#allocation1], 16
    %v453 = vld [vmem:[%s452] sm:$0xff]
    %v454 = vmul.f32 %v453, %v429
    %455 = vadd.xlane.f32.xlu0 %v454
    %v456 = vpop.xlane.xlu0 %455
    %v457 = vsub.f32 %v451, %v456
    %v458 = vmul.f32 %v457, %v436
    %v459 = vsel %vm427, %v458, 0.0
    %v460 = vadd.f32 %v453, %v459
    %s461 = scalar_lea.vmem [#allocation1], 16
    %462 = vst [vmem:[%s461] sm:$0xff] %v460
    %vm463 = vcmask 80968
    %s464 = scalar_lea.vmem [#allocation1], 9
    %v465 = vld [vmem:[%s464] ss:$0 sm:$0xff]
    %s466 = scalar_lea.vmem [#allocation0], 9
    %v467 = vld [vmem:[%s466] ss:$0 sm:$0xff]
    %v468 = vmul.f32 %v465, %v465
    %469 = vadd.xlane.f32.xlu0 %v468
    %v470 = vpop.xlane.xlu0 %469
    %v471 = vsub.f32 %v467, %v470
    %v472 = vrsqrt.pop %v471
    %s473 = scalar_lea.vmem [#allocation0], 8
    %v474 = vld [vmem:[%s473] sm:$0xff]
    %s475 = scalar_lea.vmem [#allocation1], 8
    %v476 = vld [vmem:[%s475] sm:$0xff]
    %v477 = vmul.f32 %v476, %v465
    %478 = vadd.xlane.f32.xlu0 %v477
    %v479 = vpop.xlane.xlu0 %478
    %v480 = vsub.f32 %v474, %v479
    %v481 = vmul.f32 %v480, %v472
    %vm482 = vcmask 1047553
    %vm483 = vmand %vm463, %vm482
    %v484 = vsel %vm483, %v481, 0.0
    %v485 = vadd.f32 %v476, %v484
    %s486 = scalar_lea.vmem [#allocation1], 8
    %487 = vst [vmem:[%s486] sm:$0xff] %v485
    %s488 = scalar_lea.vmem [#allocation0], 16
    %v489 = vld [vmem:[%s488] sm:$0xff]
    %s490 = scalar_lea.vmem [#allocation1], 16
    %v491 = vld [vmem:[%s490] sm:$0xff]
    %v492 = vmul.f32 %v491, %v465
    %493 = vadd.xlane.f32.xlu0 %v492
    %v494 = vpop.xlane.xlu0 %493
    %v495 = vsub.f32 %v489, %v494
    %v496 = vmul.f32 %v495, %v472
    %v497 = vsel %vm463, %v496, 0.0
    %v498 = vadd.f32 %v491, %v497
    %s499 = scalar_lea.vmem [#allocation1], 16
    %500 = vst [vmem:[%s499] sm:$0xff] %v498
    %vm501 = vcmask 89168
    %s502 = scalar_lea.vmem [#allocation1], 10
    %v503 = vld [vmem:[%s502] ss:$0 sm:$0xff]
    %s504 = scalar_lea.vmem [#allocation0], 10
    %v505 = vld [vmem:[%s504] ss:$0 sm:$0xff]
    %v506 = vmul.f32 %v503, %v503
    %507 = vadd.xlane.f32.xlu0 %v506
    %v508 = vpop.xlane.xlu0 %507
    %v509 = vsub.f32 %v505, %v508
    %v510 = vrsqrt.pop %v509
    %s511 = scalar_lea.vmem [#allocation0], 8
    %v512 = vld [vmem:[%s511] sm:$0xff]
    %s513 = scalar_lea.vmem [#allocation1], 8
    %v514 = vld [vmem:[%s513] sm:$0xff]
    %v515 = vmul.f32 %v514, %v503
    %516 = vadd.xlane.f32.xlu0 %v515
    %v517 = vpop.xlane.xlu0 %516
    %v518 = vsub.f32 %v512, %v517
    %v519 = vmul.f32 %v518, %v510
    %vm520 = vcmask 1047554
    %vm521 = vmand %vm501, %vm520
    %v522 = vsel %vm521, %v519, 0.0
    %v523 = vadd.f32 %v514, %v522
    %s524 = scalar_lea.vmem [#allocation1], 8
    %525 = vst [vmem:[%s524] sm:$0xff] %v523
    %s526 = scalar_lea.vmem [#allocation0], 16
    %v527 = vld [vmem:[%s526] sm:$0xff]
    %s528 = scalar_lea.vmem [#allocation1], 16
    %v529 = vld [vmem:[%s528] sm:$0xff]
    %v530 = vmul.f32 %v529, %v503
    %531 = vadd.xlane.f32.xlu0 %v530
    %v532 = vpop.xlane.xlu0 %531
    %v533 = vsub.f32 %v527, %v532
    %v534 = vmul.f32 %v533, %v510
    %v535 = vsel %vm501, %v534, 0.0
    %v536 = vadd.f32 %v529, %v535
    %s537 = scalar_lea.vmem [#allocation1], 16
    %538 = vst [vmem:[%s537] sm:$0xff] %v536
    %vm539 = vcmask 97368
    %s540 = scalar_lea.vmem [#allocation1], 11
    %v541 = vld [vmem:[%s540] ss:$0 sm:$0xff]
    %s542 = scalar_lea.vmem [#allocation0], 11
    %v543 = vld [vmem:[%s542] ss:$0 sm:$0xff]
    %v544 = vmul.f32 %v541, %v541
    %545 = vadd.xlane.f32.xlu0 %v544
    %v546 = vpop.xlane.xlu0 %545
    %v547 = vsub.f32 %v543, %v546
    %v548 = vrsqrt.pop %v547
    %s549 = scalar_lea.vmem [#allocation0], 8
    %v550 = vld [vmem:[%s549] sm:$0xff]
    %s551 = scalar_lea.vmem [#allocation1], 8
    %v552 = vld [vmem:[%s551] sm:$0xff]
    %v553 = vmul.f32 %v552, %v541
    %554 = vadd.xlane.f32.xlu0 %v553
    %v555 = vpop.xlane.xlu0 %554
    %v556 = vsub.f32 %v550, %v555
    %v557 = vmul.f32 %v556, %v548
    %vm558 = vcmask 1047555
    %vm559 = vmand %vm539, %vm558
    %v560 = vsel %vm559, %v557, 0.0
    %v561 = vadd.f32 %v552, %v560
    %s562 = scalar_lea.vmem [#allocation1], 8
    %563 = vst [vmem:[%s562] sm:$0xff] %v561
    %s564 = scalar_lea.vmem [#allocation0], 16
    %v565 = vld [vmem:[%s564] sm:$0xff]
    %s566 = scalar_lea.vmem [#allocation1], 16
    %v567 = vld [vmem:[%s566] sm:$0xff]
    %v568 = vmul.f32 %v567, %v541
    %569 = vadd.xlane.f32.xlu0 %v568
    %v570 = vpop.xlane.xlu0 %569
    %v571 = vsub.f32 %v565, %v570
    %v572 = vmul.f32 %v571, %v548
    %v573 = vsel %vm539, %v572, 0.0
    %v574 = vadd.f32 %v567, %v573
    %s575 = scalar_lea.vmem [#allocation1], 16
    %576 = vst [vmem:[%s575] sm:$0xff] %v574
    %vm577 = vcmask 105568
    %s578 = scalar_lea.vmem [#allocation1], 12
    %v579 = vld [vmem:[%s578] ss:$0 sm:$0xff]
    %s580 = scalar_lea.vmem [#allocation0], 12
    %v581 = vld [vmem:[%s580] ss:$0 sm:$0xff]
    %v582 = vmul.f32 %v579, %v579
    %583 = vadd.xlane.f32.xlu0 %v582
    %v584 = vpop.xlane.xlu0 %583
    %v585 = vsub.f32 %v581, %v584
    %v586 = vrsqrt.pop %v585
    %s587 = scalar_lea.vmem [#allocation0], 8
    %v588 = vld [vmem:[%s587] sm:$0xff]
    %s589 = scalar_lea.vmem [#allocation1], 8
    %v590 = vld [vmem:[%s589] sm:$0xff]
    %v591 = vmul.f32 %v590, %v579
    %592 = vadd.xlane.f32.xlu0 %v591
    %v593 = vpop.xlane.xlu0 %592
    %v594 = vsub.f32 %v588, %v593
    %v595 = vmul.f32 %v594, %v586
    %vm596 = vcmask 1047556
    %vm597 = vmand %vm577, %vm596
    %v598 = vsel %vm597, %v595, 0.0
    %v599 = vadd.f32 %v590, %v598
    %s600 = scalar_lea.vmem [#allocation1], 8
    %601 = vst [vmem:[%s600] sm:$0xff] %v599
    %s602 = scalar_lea.vmem [#allocation0], 16
    %v603 = vld [vmem:[%s602] sm:$0xff]
    %s604 = scalar_lea.vmem [#allocation1], 16
    %v605 = vld [vmem:[%s604] sm:$0xff]
    %v606 = vmul.f32 %v605, %v579
    %607 = vadd.xlane.f32.xlu0 %v606
    %v608 = vpop.xlane.xlu0 %607
    %v609 = vsub.f32 %v603, %v608
    %v610 = vmul.f32 %v609, %v586
    %v611 = vsel %vm577, %v610, 0.0
    %v612 = vadd.f32 %v605, %v611
    %s613 = scalar_lea.vmem [#allocation1], 16
    %614 = vst [vmem:[%s613] sm:$0xff] %v612
    %vm615 = vcmask 113768
    %s616 = scalar_lea.vmem [#allocation1], 13
    %v617 = vld [vmem:[%s616] ss:$0 sm:$0xff]
    %s618 = scalar_lea.vmem [#allocation0], 13
    %v619 = vld [vmem:[%s618] ss:$0 sm:$0xff]
    %v620 = vmul.f32 %v617, %v617
    %621 = vadd.xlane.f32.xlu0 %v620
    %v622 = vpop.xlane.xlu0 %621
    %v623 = vsub.f32 %v619, %v622
    %v624 = vrsqrt.pop %v623
    %s625 = scalar_lea.vmem [#allocation0], 8
    %v626 = vld [vmem:[%s625] sm:$0xff]
    %s627 = scalar_lea.vmem [#allocation1], 8
    %v628 = vld [vmem:[%s627] sm:$0xff]
    %v629 = vmul.f32 %v628, %v617
    %630 = vadd.xlane.f32.xlu0 %v629
    %v631 = vpop.xlane.xlu0 %630
    %v632 = vsub.f32 %v626, %v631
    %v633 = vmul.f32 %v632, %v624
    %vm634 = vcmask 1047557
    %vm635 = vmand %vm615, %vm634
    %v636 = vsel %vm635, %v633, 0.0
    %v637 = vadd.f32 %v628, %v636
    %s638 = scalar_lea.vmem [#allocation1], 8
    %639 = vst [vmem:[%s638] sm:$0xff] %v637
    %s640 = scalar_lea.vmem [#allocation0], 16
    %v641 = vld [vmem:[%s640] sm:$0xff]
    %s642 = scalar_lea.vmem [#allocation1], 16
    %v643 = vld [vmem:[%s642] sm:$0xff]
    %v644 = vmul.f32 %v643, %v617
    %645 = vadd.xlane.f32.xlu0 %v644
    %v646 = vpop.xlane.xlu0 %645
    %v647 = vsub.f32 %v641, %v646
    %v648 = vmul.f32 %v647, %v624
    %v649 = vsel %vm615, %v648, 0.0
    %v650 = vadd.f32 %v643, %v649
    %s651 = scalar_lea.vmem [#allocation1], 16
    %652 = vst [vmem:[%s651] sm:$0xff] %v650
    %vm653 = vcmask 121968
    %s654 = scalar_lea.vmem [#allocation1], 14
    %v655 = vld [vmem:[%s654] ss:$0 sm:$0xff]
    %s656 = scalar_lea.vmem [#allocation0], 14
    %v657 = vld [vmem:[%s656] ss:$0 sm:$0xff]
    %v658 = vmul.f32 %v655, %v655
    %659 = vadd.xlane.f32.xlu0 %v658
    %v660 = vpop.xlane.xlu0 %659
    %v661 = vsub.f32 %v657, %v660
    %v662 = vrsqrt.pop %v661
    %s663 = scalar_lea.vmem [#allocation0], 8
    %v664 = vld [vmem:[%s663] sm:$0xff]
    %s665 = scalar_lea.vmem [#allocation1], 8
    %v666 = vld [vmem:[%s665] sm:$0xff]
    %v667 = vmul.f32 %v666, %v655
    %668 = vadd.xlane.f32.xlu0 %v667
    %v669 = vpop.xlane.xlu0 %668
    %v670 = vsub.f32 %v664, %v669
    %v671 = vmul.f32 %v670, %v662
    %vm672 = vcmask 1047558
    %vm673 = vmand %vm653, %vm672
    %v674 = vsel %vm673, %v671, 0.0
    %v675 = vadd.f32 %v666, %v674
    %s676 = scalar_lea.vmem [#allocation1], 8
    %677 = vst [vmem:[%s676] sm:$0xff] %v675
    %s678 = scalar_lea.vmem [#allocation0], 16
    %v679 = vld [vmem:[%s678] sm:$0xff]
    %s680 = scalar_lea.vmem [#allocation1], 16
    %v681 = vld [vmem:[%s680] sm:$0xff]
    %v682 = vmul.f32 %v681, %v655
    %683 = vadd.xlane.f32.xlu0 %v682
    %v684 = vpop.xlane.xlu0 %683
    %v685 = vsub.f32 %v679, %v684
    %v686 = vmul.f32 %v685, %v662
    %v687 = vsel %vm653, %v686, 0.0
    %v688 = vadd.f32 %v681, %v687
    %s689 = scalar_lea.vmem [#allocation1], 16
    %690 = vst [vmem:[%s689] sm:$0xff] %v688
    %vm691 = vcmask 130168
    %s692 = scalar_lea.vmem [#allocation1], 15
    %v693 = vld [vmem:[%s692] ss:$0 sm:$0xff]
    %s694 = scalar_lea.vmem [#allocation0], 15
    %v695 = vld [vmem:[%s694] ss:$0 sm:$0xff]
    %v696 = vmul.f32 %v693, %v693
    %697 = vadd.xlane.f32.xlu0 %v696
    %v698 = vpop.xlane.xlu0 %697
    %v699 = vsub.f32 %v695, %v698
    %v700 = vrsqrt.pop %v699
    %s701 = scalar_lea.vmem [#allocation0], 8
    %v702 = vld [vmem:[%s701] sm:$0xff]
    %s703 = scalar_lea.vmem [#allocation1], 8
    %v704 = vld [vmem:[%s703] sm:$0xff]
    %v705 = vmul.f32 %v704, %v693
    %706 = vadd.xlane.f32.xlu0 %v705
    %v707 = vpop.xlane.xlu0 %706
    %v708 = vsub.f32 %v702, %v707
    %v709 = vmul.f32 %v708, %v700
    %vm710 = vcmask 1047559
    %vm711 = vmand %vm691, %vm710
    %v712 = vsel %vm711, %v709, 0.0
    %v713 = vadd.f32 %v704, %v712
    %s714 = scalar_lea.vmem [#allocation1], 8
    %715 = vst [vmem:[%s714] sm:$0xff] %v713
    %s716 = scalar_lea.vmem [#allocation0], 16
    %v717 = vld [vmem:[%s716] sm:$0xff]
    %s718 = scalar_lea.vmem [#allocation1], 16
    %v719 = vld [vmem:[%s718] sm:$0xff]
    %v720 = vmul.f32 %v719, %v693
    %721 = vadd.xlane.f32.xlu0 %v720
    %v722 = vpop.xlane.xlu0 %721
    %v723 = vsub.f32 %v717, %v722
    %v724 = vmul.f32 %v723, %v700
    %v725 = vsel %vm691, %v724, 0.0
    %v726 = vadd.f32 %v719, %v725
    %s727 = scalar_lea.vmem [#allocation1], 16
    %728 = vst [vmem:[%s727] sm:$0xff] %v726
    %vm729 = vcmask 138368
    %s730 = scalar_lea.vmem [#allocation1], 16
    %v731 = vld [vmem:[%s730] ss:$0 sm:$0xff]
    %s732 = scalar_lea.vmem [#allocation0], 16
    %v733 = vld [vmem:[%s732] ss:$0 sm:$0xff]
    %v734 = vmul.f32 %v731, %v731
    %735 = vadd.xlane.f32.xlu0 %v734
    %v736 = vpop.xlane.xlu0 %735
    %v737 = vsub.f32 %v733, %v736
    %v738 = vrsqrt.pop %v737
    %s739 = scalar_lea.vmem [#allocation0], 16
    %v740 = vld [vmem:[%s739] sm:$0xff]
    %s741 = scalar_lea.vmem [#allocation1], 16
    %v742 = vld [vmem:[%s741] sm:$0xff]
    %v743 = vmul.f32 %v742, %v731
    %744 = vadd.xlane.f32.xlu0 %v743
    %v745 = vpop.xlane.xlu0 %744
    %v746 = vsub.f32 %v740, %v745
    %v747 = vmul.f32 %v746, %v738
    %v748 = vsel %vm729, %v747, 0.0
    %v749 = vadd.f32 %v742, %v748
    %s750 = scalar_lea.vmem [#allocation1], 16
    %751 = vst [vmem:[%s750] sm:$0xff] %v749
    %vm752 = vcmask 146568
    %s753 = scalar_lea.vmem [#allocation1], 17
    %v754 = vld [vmem:[%s753] ss:$0 sm:$0xff]
    %s755 = scalar_lea.vmem [#allocation0], 17
    %v756 = vld [vmem:[%s755] ss:$0 sm:$0xff]
    %v757 = vmul.f32 %v754, %v754
    %758 = vadd.xlane.f32.xlu0 %v757
    %v759 = vpop.xlane.xlu0 %758
    %v760 = vsub.f32 %v756, %v759
    %v761 = vrsqrt.pop %v760
    %s762 = scalar_lea.vmem [#allocation0], 16
    %v763 = vld [vmem:[%s762] sm:$0xff]
    %s764 = scalar_lea.vmem [#allocation1], 16
    %v765 = vld [vmem:[%s764] sm:$0xff]
    %v766 = vmul.f32 %v765, %v754
    %767 = vadd.xlane.f32.xlu0 %v766
    %v768 = vpop.xlane.xlu0 %767
    %v769 = vsub.f32 %v763, %v768
    %v770 = vmul.f32 %v769, %v761
    %vm771 = vcmask 1047553
    %vm772 = vmand %vm752, %vm771
    %v773 = vsel %vm772, %v770, 0.0
    %v774 = vadd.f32 %v765, %v773
    %s775 = scalar_lea.vmem [#allocation1], 16
    %776 = vst [vmem:[%s775] sm:$0xff] %v774
    // Predicated region
    $region36: #{custom-call.47} parent=1 // pred_check
      _
    $region37: #{custom-call.47} parent=1 // pred_check_branch
      %778 = sbr.rel (0) target = $region39
    $region38: #{custom-call.47} parent=1 // pred_region
      // Predicated region
      $region40: #{custom-call.47} parent=38 // pred_check
        _
      $region41: #{custom-call.47} parent=38 // pred_check_branch
        %780 = sbr.rel (0) target = $region43
      $region42: #{custom-call.47} parent=38 // pred_region
        // Predicated region
        $region55: #{custom-call.47} parent=42 // pred_check
          _
        $region56: #{custom-call.47} parent=42 // pred_check_branch
          %799 = sbr.rel (0) target = $region58
        $region57: #{custom-call.47} parent=42 // pred_region
          loop: start=0, step=1, limit=1
          $region59: #{custom-call.47} parent=57 // loop_pre_header
            _
          $region60: #{custom-call.47} parent=57 // loop_header
            %s801 = sphi 0, %s805
            %p802 = scmp.ge.s32.totalorder %s801, 1
            %s806 = sphi [#allocation1], [#allocation1]
            %s807 = sphi %s1, %s1
          $region61: #{custom-call.47} parent=57 // loop_header_branch
            %804 = sbr.rel (%p802) target = $region65
          $region62: #{custom-call.47} parent=57 // loop_body
            %v808 = vld [vmem:[%s806] sm:$0xff]
            %809 = vst [vmem:[%s807] sm:$0xff] %v808
            %v810 = vld [vmem:[%s806 + $0x8] sm:$0xff]
            %811 = vst [vmem:[%s807 + $0x8] sm:$0xff] %v810
            %v812 = vld [vmem:[%s806 + $0x10] sm:$0xff]
            %813 = vst [vmem:[%s807 + $0x10] sm:$0xff] %v812
          $region63: #{custom-call.47} parent=57 // loop_footer
            %s805 = sadd.s32 1, %s801
          $region64: #{custom-call.47} parent=57 // loop_footer_branch
            %800 = sbr.rel target = $region60
          $region65: #{custom-call.47} parent=57 // loop_exit
            _
        $region58: #{custom-call.47} parent=42 // pred_fallthru
          _
        // Predicated region
        $region66: #{custom-call.47} parent=42 // pred_check
          _
        $region67: #{custom-call.47} parent=42 // pred_check_branch
          %815 = sbr.rel target = $region69
        $region68: #{custom-call.47} parent=42 // pred_region
          _
        $region69: #{custom-call.47} parent=42 // pred_fallthru
          _
      $region43: #{custom-call.47} parent=38 // pred_fallthru
        _
      // Predicated region
      $region44: #{custom-call.47} parent=38 // pred_check
        _
      $region45: #{custom-call.47} parent=38 // pred_check_branch
        %782 = sbr.rel target = $region47
      $region46: #{custom-call.47} parent=38 // pred_region
        loop: start=0, step=1, limit=1
        $region48: #{custom-call.47} parent=46 // loop_pre_header
          _
        $region49: #{custom-call.47} parent=46 // loop_header
          %s785 = sphi 0, %s789
          %p786 = scmp.ge.s32.totalorder %s785, 1
          %s790 = sphi [#allocation1], [#allocation1]
          %s791 = sphi %s1, %s1
        $region50: #{custom-call.47} parent=46 // loop_header_branch
          %788 = sbr.rel (%p786) target = $region54
        $region51: #{custom-call.47} parent=46 // loop_body
          %v792 = vld [vmem:[%s790] sm:$0xff]
          %793 = vst [vmem:[%s791] sm:$0xff] %v792
          %v794 = vld [vmem:[%s790 + $0x8] sm:$0xff]
          %795 = vst [vmem:[%s791 + $0x8] sm:$0xff] %v794
          %v796 = vld [vmem:[%s790 + $0x10] sm:$0xff]
          %797 = vst [vmem:[%s791 + $0x10] sm:$0xff] %v796
        $region52: #{custom-call.47} parent=46 // loop_footer
          %s789 = sadd.s32 1, %s785
        $region53: #{custom-call.47} parent=46 // loop_footer_branch
          %784 = sbr.rel target = $region49
        $region54: #{custom-call.47} parent=46 // loop_exit
          _
      $region47: #{custom-call.47} parent=38 // pred_fallthru
        _
    $region39: #{custom-call.47} parent=1 // pred_fallthru
      _
    %816 = vnop

// kernel: custom-call.48
$region0: #{custom-call.48}
  %s0 = inlined_call_operand.vmem [shape: f32[1,18,18], index: 0, kind: input, shape index: {}]
  %s1 = inlined_call_operand.vmem [shape: f32[1,18,18], index: 1, kind: output, shape index: {}]
  $region1: #{custom-call.48} parent=0
    #allocation0 [shape = 'u8[12288]{0}', space=vmem, size = 0x3000, scoped, tag = 'operand span for operand 0']
    #allocation1 [shape = 'u8[12288]{0}', space=vmem, size = 0x3000, scoped, tag = 'operand span for operand 1']
    #allocation2 [shape = 'f32[18,18]{1,0}', space=vmem, size = 0x3000, scoped, tag = 'rescaled input a']
    // Predicated region
    $region2: #{custom-call.48} parent=1 // pred_check
      _
    $region3: #{custom-call.48} parent=1 // pred_check_branch
      %3 = sbr.rel (0) target = $region5
    $region4: #{custom-call.48} parent=1 // pred_region
      // Predicated region
      $region6: #{custom-call.48} parent=4 // pred_check
        _
      $region7: #{custom-call.48} parent=4 // pred_check_branch
        %5 = sbr.rel (0) target = $region9
      $region8: #{custom-call.48} parent=4 // pred_region
        // Predicated region
        $region21: #{custom-call.48} parent=8 // pred_check
          _
        $region22: #{custom-call.48} parent=8 // pred_check_branch
          %24 = sbr.rel (0) target = $region24
        $region23: #{custom-call.48} parent=8 // pred_region
          loop: start=0, step=1, limit=1
          $region25: #{custom-call.48} parent=23 // loop_pre_header
            _
          $region26: #{custom-call.48} parent=23 // loop_header
            %s26 = sphi 0, %s30
            %p27 = scmp.ge.s32.totalorder %s26, 1
            %s31 = sphi %s0, %s0
            %s32 = sphi [#allocation0], [#allocation0]
          $region27: #{custom-call.48} parent=23 // loop_header_branch
            %29 = sbr.rel (%p27) target = $region31
          $region28: #{custom-call.48} parent=23 // loop_body
            %v33 = vld [vmem:[%s31] sm:$0xff]
            %34 = vst [vmem:[%s32] sm:$0xff] %v33
            %v35 = vld [vmem:[%s31 + $0x8] sm:$0xff]
            %36 = vst [vmem:[%s32 + $0x8] sm:$0xff] %v35
            %v37 = vld [vmem:[%s31 + $0x10] sm:$0xff]
            %38 = vst [vmem:[%s32 + $0x10] sm:$0xff] %v37
          $region29: #{custom-call.48} parent=23 // loop_footer
            %s30 = sadd.s32 1, %s26
          $region30: #{custom-call.48} parent=23 // loop_footer_branch
            %25 = sbr.rel target = $region26
          $region31: #{custom-call.48} parent=23 // loop_exit
            _
        $region24: #{custom-call.48} parent=8 // pred_fallthru
          _
        // Predicated region
        $region32: #{custom-call.48} parent=8 // pred_check
          _
        $region33: #{custom-call.48} parent=8 // pred_check_branch
          %40 = sbr.rel target = $region35
        $region34: #{custom-call.48} parent=8 // pred_region
          _
        $region35: #{custom-call.48} parent=8 // pred_fallthru
          _
      $region9: #{custom-call.48} parent=4 // pred_fallthru
        _
      // Predicated region
      $region10: #{custom-call.48} parent=4 // pred_check
        _
      $region11: #{custom-call.48} parent=4 // pred_check_branch
        %7 = sbr.rel target = $region13
      $region12: #{custom-call.48} parent=4 // pred_region
        loop: start=0, step=1, limit=1
        $region14: #{custom-call.48} parent=12 // loop_pre_header
          _
        $region15: #{custom-call.48} parent=12 // loop_header
          %s10 = sphi 0, %s14
          %p11 = scmp.ge.s32.totalorder %s10, 1
          %s15 = sphi %s0, %s0
          %s16 = sphi [#allocation0], [#allocation0]
        $region16: #{custom-call.48} parent=12 // loop_header_branch
          %13 = sbr.rel (%p11) target = $region20
        $region17: #{custom-call.48} parent=12 // loop_body
          %v17 = vld [vmem:[%s15] sm:$0xff]
          %18 = vst [vmem:[%s16] sm:$0xff] %v17
          %v19 = vld [vmem:[%s15 + $0x8] sm:$0xff]
          %20 = vst [vmem:[%s16 + $0x8] sm:$0xff] %v19
          %v21 = vld [vmem:[%s15 + $0x10] sm:$0xff]
          %22 = vst [vmem:[%s16 + $0x10] sm:$0xff] %v21
        $region18: #{custom-call.48} parent=12 // loop_footer
          %s14 = sadd.s32 1, %s10
        $region19: #{custom-call.48} parent=12 // loop_footer_branch
          %9 = sbr.rel target = $region15
        $region20: #{custom-call.48} parent=12 // loop_exit
          _
      $region13: #{custom-call.48} parent=4 // pred_fallthru
        _
    $region5: #{custom-call.48} parent=1 // pred_fallthru
      _
    %41 = vnop
    %v42 = vlaneseq
    %v43 = vand.u32 %v42, 127
    %vm44 = vcmp.lt.s32.totalorder %v43, 18
    %v45 = vlaneseq
    %v46 = vshrl.u32 %v45, 7
    %vm48 = vcmp.eq.s32.totalorder %v46, %v43
    %v49 = vld [vmem:[#allocation0] sm:$0xff]
    %v50 = vsel %vm48, %v49, 0.0
    %51 = vadd.xlane.f32.xlu0 %v50
    %v52 = vpop.xlane.xlu0 %51
    %vm53 = vcmp.ge.s32.totalorder %v46, %v43
    %vm54 = vmand %vm53, %vm44
    %v55 = vsel %vm54, %v49, 0.0
    %v56 = vrcp.pop %v52
    %v57 = vmul.f32 %v55, %v56
    %58 = vst [vmem:[#allocation2] sm:$0xff] %v57
    %s59 = scalar_lea.vmem [#allocation0], 8
    %s60 = scalar_lea.vmem [#allocation2], 8
    %v61 = vlaneseq
    %v62 = vshrl.u32 %v61, 7
    %v63 = vadd.s32 %v62, 8
    %vm64 = vcmp.eq.s32.totalorder %v63, %v43
    %v65 = vld [vmem:[%s59] sm:$0xff]
    %v66 = vsel %vm64, %v65, 0.0
    %67 = vadd.xlane.f32.xlu0 %v66
    %v68 = vpop.xlane.xlu0 %67
    %vm69 = vcmp.ge.s32.totalorder %v63, %v43
    %vm70 = vmand %vm69, %vm44
    %v71 = vsel %vm70, %v65, 0.0
    %v72 = vrcp.pop %v68
    %v73 = vmul.f32 %v71, %v72
    %74 = vst [vmem:[%s60] sm:$0xff] %v73
    %s75 = scalar_lea.vmem [#allocation0], 16
    %s76 = scalar_lea.vmem [#allocation2], 16
    %v77 = vlaneseq
    %v78 = vshrl.u32 %v77, 7
    %v79 = vadd.s32 %v78, 16
    %vm80 = vcmp.eq.s32.totalorder %v79, %v43
    %v81 = vld [vmem:[%s75] sm:$0xff]
    %v82 = vsel %vm80, %v81, 0.0
    %83 = vadd.xlane.f32.xlu0 %v82
    %v84 = vpop.xlane.xlu0 %83
    %vm85 = vcmp.ge.s32.totalorder %v79, %v43
    %vm86 = vmand %vm85, %vm44
    %v87 = vsel %vm86, %v81, 0.0
    %v88 = vrcp.pop %v84
    %v89 = vmul.f32 %v87, %v88
    %90 = vst [vmem:[%s76] sm:$0xff] %v89
    %v91 = vlaneseq
    %v92 = vand.u32 %v91, 127
    %v93 = vlaneseq
    %v94 = vshrl.u32 %v93, 7
    %vm96 = vcmp.eq.s32.totalorder %v92, %v94
    %v97 = vlaneseq
    %v98 = vand.u32 %v97, 127
    %vm99 = vcmp.eq.s32.totalorder %v98, 0
    %v100 = vsel %vm99, 1.0, -1.0
    %v101 = vsel %vm96, %v100, 0.0
    %v102 = vlaneseq
    %v103 = vand.u32 %v102, 127
    %v104 = vlaneseq
    %v105 = vshrl.u32 %v104, 7
    %v106 = vadd.s32 %v105, 8
    %vm107 = vcmp.eq.s32.totalorder %v103, %v106
    %v108 = vsel %vm107, -1.0, 0.0
    %v109 = vlaneseq
    %v110 = vand.u32 %v109, 127
    %v111 = vlaneseq
    %v112 = vshrl.u32 %v111, 7
    %v113 = vadd.s32 %v112, 16
    %vm114 = vcmp.eq.s32.totalorder %v110, %v113
    %v115 = vsel %vm114, -1.0, 0.0
    %s116 = scalar_lea.vmem [#allocation2], 1
    %v117 = vld [vmem:[%s116] ss:$0 sm:$0xff]
    %v118 = vxor.u32 %v117, 2147483648
    %v119 = vlaneseq
    %v120 = vand.u32 %v119, 127
    %vm121 = vcmp.eq.s32.totalorder %v120, 1
    %v122 = vmul.f32 %v118, %v101
    %123 = vadd.xlane.f32.xlu0 %v122
    %v124 = vpop.xlane.xlu0 %123
    %v125 = vsel %vm121, %v124, %v101
    %s126 = scalar_lea.vmem [#allocation2], 2
    %v127 = vld [vmem:[%s126] ss:$0 sm:$0xff]
    %v128 = vxor.u32 %v127, 2147483648
    %v129 = vlaneseq
    %v130 = vand.u32 %v129, 127
    %vm131 = vcmp.eq.s32.totalorder %v130, 2
    %v132 = vmul.f32 %v128, %v125
    %133 = vadd.xlane.f32.xlu0 %v132
    %v134 = vpop.xlane.xlu0 %133
    %v135 = vsel %vm131, %v134, %v125
    %s136 = scalar_lea.vmem [#allocation2], 3
    %v137 = vld [vmem:[%s136] ss:$0 sm:$0xff]
    %v138 = vxor.u32 %v137, 2147483648
    %v139 = vlaneseq
    %v140 = vand.u32 %v139, 127
    %vm141 = vcmp.eq.s32.totalorder %v140, 3
    %v142 = vmul.f32 %v138, %v135
    %143 = vadd.xlane.f32.xlu0 %v142
    %v144 = vpop.xlane.xlu0 %143
    %v145 = vsel %vm141, %v144, %v135
    %s146 = scalar_lea.vmem [#allocation2], 4
    %v147 = vld [vmem:[%s146] ss:$0 sm:$0xff]
    %v148 = vxor.u32 %v147, 2147483648
    %v149 = vlaneseq
    %v150 = vand.u32 %v149, 127
    %vm151 = vcmp.eq.s32.totalorder %v150, 4
    %v152 = vmul.f32 %v148, %v145
    %153 = vadd.xlane.f32.xlu0 %v152
    %v154 = vpop.xlane.xlu0 %153
    %v155 = vsel %vm151, %v154, %v145
    %s156 = scalar_lea.vmem [#allocation2], 5
    %v157 = vld [vmem:[%s156] ss:$0 sm:$0xff]
    %v158 = vxor.u32 %v157, 2147483648
    %v159 = vlaneseq
    %v160 = vand.u32 %v159, 127
    %vm161 = vcmp.eq.s32.totalorder %v160, 5
    %v162 = vmul.f32 %v158, %v155
    %163 = vadd.xlane.f32.xlu0 %v162
    %v164 = vpop.xlane.xlu0 %163
    %v165 = vsel %vm161, %v164, %v155
    %s166 = scalar_lea.vmem [#allocation2], 6
    %v167 = vld [vmem:[%s166] ss:$0 sm:$0xff]
    %v168 = vxor.u32 %v167, 2147483648
    %v169 = vlaneseq
    %v170 = vand.u32 %v169, 127
    %vm171 = vcmp.eq.s32.totalorder %v170, 6
    %v172 = vmul.f32 %v168, %v165
    %173 = vadd.xlane.f32.xlu0 %v172
    %v174 = vpop.xlane.xlu0 %173
    %v175 = vsel %vm171, %v174, %v165
    %s176 = scalar_lea.vmem [#allocation2], 7
    %v177 = vld [vmem:[%s176] ss:$0 sm:$0xff]
    %v178 = vxor.u32 %v177, 2147483648
    %v179 = vlaneseq
    %v180 = vand.u32 %v179, 127
    %vm181 = vcmp.eq.s32.totalorder %v180, 7
    %v182 = vmul.f32 %v178, %v175
    %183 = vadd.xlane.f32.xlu0 %v182
    %v184 = vpop.xlane.xlu0 %183
    %v185 = vsel %vm181, %v184, %v175
    %s186 = scalar_lea.vmem [#allocation2], 8
    %v187 = vld [vmem:[%s186] ss:$0 sm:$0xff]
    %v188 = vxor.u32 %v187, 2147483648
    %v189 = vlaneseq
    %v190 = vand.u32 %v189, 127
    %vm191 = vcmp.eq.s32.totalorder %v190, 8
    %v192 = vmul.f32 %v188, %v185
    %193 = vadd.xlane.f32.xlu0 %v192
    %v194 = vpop.xlane.xlu0 %193
    %v195 = vsel %vm191, %v194, %v185
    %v196 = vmul.f32 %v188, %v108
    %197 = vadd.xlane.f32.xlu0 %v196
    %v198 = vpop.xlane.xlu0 %197
    %v199 = vsel %vm191, %v198, %v108
    %s200 = scalar_lea.vmem [#allocation2], 9
    %v201 = vld [vmem:[%s200] ss:$0 sm:$0xff]
    %v202 = vxor.u32 %v201, 2147483648
    %v203 = vlaneseq
    %v204 = vand.u32 %v203, 127
    %vm205 = vcmp.eq.s32.totalorder %v204, 9
    %v206 = vmul.f32 %v202, %v195
    %207 = vadd.xlane.f32.xlu0 %v206
    %v208 = vpop.xlane.xlu0 %207
    %v209 = vsel %vm205, %v208, %v195
    %v210 = vmul.f32 %v202, %v199
    %211 = vadd.xlane.f32.xlu0 %v210
    %v212 = vpop.xlane.xlu0 %211
    %v213 = vsel %vm205, %v212, %v199
    %s214 = scalar_lea.vmem [#allocation2], 10
    %v215 = vld [vmem:[%s214] ss:$0 sm:$0xff]
    %v216 = vxor.u32 %v215, 2147483648
    %v217 = vlaneseq
    %v218 = vand.u32 %v217, 127
    %vm219 = vcmp.eq.s32.totalorder %v218, 10
    %v220 = vmul.f32 %v216, %v209
    %221 = vadd.xlane.f32.xlu0 %v220
    %v222 = vpop.xlane.xlu0 %221
    %v223 = vsel %vm219, %v222, %v209
    %v224 = vmul.f32 %v216, %v213
    %225 = vadd.xlane.f32.xlu0 %v224
    %v226 = vpop.xlane.xlu0 %225
    %v227 = vsel %vm219, %v226, %v213
    %s228 = scalar_lea.vmem [#allocation2], 11
    %v229 = vld [vmem:[%s228] ss:$0 sm:$0xff]
    %v230 = vxor.u32 %v229, 2147483648
    %v231 = vlaneseq
    %v232 = vand.u32 %v231, 127
    %vm233 = vcmp.eq.s32.totalorder %v232, 11
    %v234 = vmul.f32 %v230, %v223
    %235 = vadd.xlane.f32.xlu0 %v234
    %v236 = vpop.xlane.xlu0 %235
    %v237 = vsel %vm233, %v236, %v223
    %v238 = vmul.f32 %v230, %v227
    %239 = vadd.xlane.f32.xlu0 %v238
    %v240 = vpop.xlane.xlu0 %239
    %v241 = vsel %vm233, %v240, %v227
    %s242 = scalar_lea.vmem [#allocation2], 12
    %v243 = vld [vmem:[%s242] ss:$0 sm:$0xff]
    %v244 = vxor.u32 %v243, 2147483648
    %v245 = vlaneseq
    %v246 = vand.u32 %v245, 127
    %vm247 = vcmp.eq.s32.totalorder %v246, 12
    %v248 = vmul.f32 %v244, %v237
    %249 = vadd.xlane.f32.xlu0 %v248
    %v250 = vpop.xlane.xlu0 %249
    %v251 = vsel %vm247, %v250, %v237
    %v252 = vmul.f32 %v244, %v241
    %253 = vadd.xlane.f32.xlu0 %v252
    %v254 = vpop.xlane.xlu0 %253
    %v255 = vsel %vm247, %v254, %v241
    %s256 = scalar_lea.vmem [#allocation2], 13
    %v257 = vld [vmem:[%s256] ss:$0 sm:$0xff]
    %v258 = vxor.u32 %v257, 2147483648
    %v259 = vlaneseq
    %v260 = vand.u32 %v259, 127
    %vm261 = vcmp.eq.s32.totalorder %v260, 13
    %v262 = vmul.f32 %v258, %v251
    %263 = vadd.xlane.f32.xlu0 %v262
    %v264 = vpop.xlane.xlu0 %263
    %v265 = vsel %vm261, %v264, %v251
    %v266 = vmul.f32 %v258, %v255
    %267 = vadd.xlane.f32.xlu0 %v266
    %v268 = vpop.xlane.xlu0 %267
    %v269 = vsel %vm261, %v268, %v255
    %s270 = scalar_lea.vmem [#allocation2], 14
    %v271 = vld [vmem:[%s270] ss:$0 sm:$0xff]
    %v272 = vxor.u32 %v271, 2147483648
    %v273 = vlaneseq
    %v274 = vand.u32 %v273, 127
    %vm275 = vcmp.eq.s32.totalorder %v274, 14
    %v276 = vmul.f32 %v272, %v265
    %277 = vadd.xlane.f32.xlu0 %v276
    %v278 = vpop.xlane.xlu0 %277
    %v279 = vsel %vm275, %v278, %v265
    %v280 = vmul.f32 %v272, %v269
    %281 = vadd.xlane.f32.xlu0 %v280
    %v282 = vpop.xlane.xlu0 %281
    %v283 = vsel %vm275, %v282, %v269
    %s284 = scalar_lea.vmem [#allocation2], 15
    %v285 = vld [vmem:[%s284] ss:$0 sm:$0xff]
    %v286 = vxor.u32 %v285, 2147483648
    %v287 = vlaneseq
    %v288 = vand.u32 %v287, 127
    %vm289 = vcmp.eq.s32.totalorder %v288, 15
    %v290 = vmul.f32 %v286, %v279
    %291 = vadd.xlane.f32.xlu0 %v290
    %v292 = vpop.xlane.xlu0 %291
    %v293 = vsel %vm289, %v292, %v279
    %v294 = vmul.f32 %v286, %v283
    %295 = vadd.xlane.f32.xlu0 %v294
    %v296 = vpop.xlane.xlu0 %295
    %v297 = vsel %vm289, %v296, %v283
    %s298 = scalar_lea.vmem [#allocation2], 16
    %v299 = vld [vmem:[%s298] ss:$0 sm:$0xff]
    %v300 = vxor.u32 %v299, 2147483648
    %v301 = vlaneseq
    %v302 = vand.u32 %v301, 127
    %vm303 = vcmp.eq.s32.totalorder %v302, 16
    %v304 = vmul.f32 %v300, %v293
    %305 = vadd.xlane.f32.xlu0 %v304
    %v306 = vpop.xlane.xlu0 %305
    %v307 = vsel %vm303, %v306, %v293
    %v308 = vmul.f32 %v300, %v297
    %309 = vadd.xlane.f32.xlu0 %v308
    %v310 = vpop.xlane.xlu0 %309
    %v311 = vsel %vm303, %v310, %v297
    %v312 = vmul.f32 %v300, %v115
    %313 = vadd.xlane.f32.xlu0 %v312
    %v314 = vpop.xlane.xlu0 %313
    %v315 = vsel %vm303, %v314, %v115
    %s316 = scalar_lea.vmem [#allocation2], 17
    %v317 = vld [vmem:[%s316] ss:$0 sm:$0xff]
    %v318 = vxor.u32 %v317, 2147483648
    %v319 = vlaneseq
    %v320 = vand.u32 %v319, 127
    %vm321 = vcmp.eq.s32.totalorder %v320, 17
    %v322 = vmul.f32 %v318, %v307
    %323 = vadd.xlane.f32.xlu0 %v322
    %v324 = vpop.xlane.xlu0 %323
    %v325 = vsel %vm321, %v324, %v307
    %v326 = vmul.f32 %v318, %v311
    %327 = vadd.xlane.f32.xlu0 %v326
    %v328 = vpop.xlane.xlu0 %327
    %v329 = vsel %vm321, %v328, %v311
    %v330 = vmul.f32 %v318, %v315
    %331 = vadd.xlane.f32.xlu0 %v330
    %v332 = vpop.xlane.xlu0 %331
    %v333 = vsel %vm321, %v332, %v315
    %v334 = vrcp.pop %v52
    %v335 = vmul.f32 %v325, %v334
    %vm336 = vweird.f32 %v52
    %v337 = vsel %vm336, %v325, %v335
    %338 = vst [vmem:[#allocation1] sm:$0xff] %v337
    %v339 = vrcp.pop %v68
    %v340 = vmul.f32 %v329, %v339
    %vm341 = vweird.f32 %v68
    %v342 = vsel %vm341, %v329, %v340
    %s343 = scalar_lea.vmem [#allocation1], 8
    %344 = vst [vmem:[%s343] sm:$0xff] %v342
    %v345 = vrcp.pop %v84
    %v346 = vmul.f32 %v333, %v345
    %vm347 = vweird.f32 %v84
    %v348 = vsel %vm347, %v333, %v346
    %s349 = scalar_lea.vmem [#allocation1], 16
    %350 = vst [vmem:[%s349] sm:$0xff] %v348
    // Predicated region
    $region36: #{custom-call.48} parent=1 // pred_check
      _
    $region37: #{custom-call.48} parent=1 // pred_check_branch
      %352 = sbr.rel (0) target = $region39
    $region38: #{custom-call.48} parent=1 // pred_region
      // Predicated region
      $region40: #{custom-call.48} parent=38 // pred_check
        _
      $region41: #{custom-call.48} parent=38 // pred_check_branch
        %354 = sbr.rel (0) target = $region43
      $region42: #{custom-call.48} parent=38 // pred_region
        // Predicated region
        $region55: #{custom-call.48} parent=42 // pred_check
          _
        $region56: #{custom-call.48} parent=42 // pred_check_branch
          %373 = sbr.rel (0) target = $region58
        $region57: #{custom-call.48} parent=42 // pred_region
          loop: start=0, step=1, limit=1
          $region59: #{custom-call.48} parent=57 // loop_pre_header
            _
          $region60: #{custom-call.48} parent=57 // loop_header
            %s375 = sphi 0, %s379
            %p376 = scmp.ge.s32.totalorder %s375, 1
            %s380 = sphi [#allocation1], [#allocation1]
            %s381 = sphi %s1, %s1
          $region61: #{custom-call.48} parent=57 // loop_header_branch
            %378 = sbr.rel (%p376) target = $region65
          $region62: #{custom-call.48} parent=57 // loop_body
            %v382 = vld [vmem:[%s380] sm:$0xff]
            %383 = vst [vmem:[%s381] sm:$0xff] %v382
            %v384 = vld [vmem:[%s380 + $0x8] sm:$0xff]
            %385 = vst [vmem:[%s381 + $0x8] sm:$0xff] %v384
            %v386 = vld [vmem:[%s380 + $0x10] sm:$0xff]
            %387 = vst [vmem:[%s381 + $0x10] sm:$0xff] %v386
          $region63: #{custom-call.48} parent=57 // loop_footer
            %s379 = sadd.s32 1, %s375
          $region64: #{custom-call.48} parent=57 // loop_footer_branch
            %374 = sbr.rel target = $region60
          $region65: #{custom-call.48} parent=57 // loop_exit
            _
        $region58: #{custom-call.48} parent=42 // pred_fallthru
          _
        // Predicated region
        $region66: #{custom-call.48} parent=42 // pred_check
          _
        $region67: #{custom-call.48} parent=42 // pred_check_branch
          %389 = sbr.rel target = $region69
        $region68: #{custom-call.48} parent=42 // pred_region
          _
        $region69: #{custom-call.48} parent=42 // pred_fallthru
          _
      $region43: #{custom-call.48} parent=38 // pred_fallthru
        _
      // Predicated region
      $region44: #{custom-call.48} parent=38 // pred_check
        _
      $region45: #{custom-call.48} parent=38 // pred_check_branch
        %356 = sbr.rel target = $region47
      $region46: #{custom-call.48} parent=38 // pred_region
        loop: start=0, step=1, limit=1
        $region48: #{custom-call.48} parent=46 // loop_pre_header
          _
        $region49: #{custom-call.48} parent=46 // loop_header
          %s359 = sphi 0, %s363
          %p360 = scmp.ge.s32.totalorder %s359, 1
          %s364 = sphi [#allocation1], [#allocation1]
          %s365 = sphi %s1, %s1
        $region50: #{custom-call.48} parent=46 // loop_header_branch
          %362 = sbr.rel (%p360) target = $region54
        $region51: #{custom-call.48} parent=46 // loop_body
          %v366 = vld [vmem:[%s364] sm:$0xff]
          %367 = vst [vmem:[%s365] sm:$0xff] %v366
          %v368 = vld [vmem:[%s364 + $0x8] sm:$0xff]
          %369 = vst [vmem:[%s365 + $0x8] sm:$0xff] %v368
          %v370 = vld [vmem:[%s364 + $0x10] sm:$0xff]
          %371 = vst [vmem:[%s365 + $0x10] sm:$0xff] %v370
        $region52: #{custom-call.48} parent=46 // loop_footer
          %s363 = sadd.s32 1, %s359
        $region53: #{custom-call.48} parent=46 // loop_footer_branch
          %358 = sbr.rel target = $region49
        $region54: #{custom-call.48} parent=46 // loop_exit
          _
      $region47: #{custom-call.48} parent=38 // pred_fallthru
        _
    $region39: #{custom-call.48} parent=1 // pred_fallthru
      _
    %390 = vnop

// kernel: custom-call.49
$region0: #{custom-call.49}
  %s0 = inlined_call_operand.vmem [shape: f32[6,6], index: 0, kind: input, shape index: {}]
  %s1 = inlined_call_operand.vmem [shape: f32[6,6], index: 1, kind: output, shape index: {}]
  $region1: #{custom-call.49} parent=0
    #allocation0 [shape = 'u8[4096]{0}', space=vmem, size = 0x1000, scoped, tag = 'operand span for operand 0']
    #allocation1 [shape = 'u8[4096]{0}', space=vmem, size = 0x1000, scoped, tag = 'operand span for operand 1']
    // Predicated region
    $region2: #{custom-call.49} parent=1 // pred_check
      _
    $region3: #{custom-call.49} parent=1 // pred_check_branch
      %3 = sbr.rel (0) target = $region5
    $region4: #{custom-call.49} parent=1 // pred_region
      // Predicated region
      $region6: #{custom-call.49} parent=4 // pred_check
        _
      $region7: #{custom-call.49} parent=4 // pred_check_branch
        %5 = sbr.rel (0) target = $region9
      $region8: #{custom-call.49} parent=4 // pred_region
        // Predicated region
        $region21: #{custom-call.49} parent=8 // pred_check
          _
        $region22: #{custom-call.49} parent=8 // pred_check_branch
          %20 = sbr.rel (0) target = $region24
        $region23: #{custom-call.49} parent=8 // pred_region
          loop: start=0, step=1, limit=1
          $region25: #{custom-call.49} parent=23 // loop_pre_header
            _
          $region26: #{custom-call.49} parent=23 // loop_header
            %s22 = sphi 0, %s26
            %p23 = scmp.ge.s32.totalorder %s22, 1
            %s27 = sphi %s0, %s0
            %s28 = sphi [#allocation0], [#allocation0]
          $region27: #{custom-call.49} parent=23 // loop_header_branch
            %25 = sbr.rel (%p23) target = $region31
          $region28: #{custom-call.49} parent=23 // loop_body
            %v29 = vld [vmem:[%s27] sm:$0xff]
            %30 = vst [vmem:[%s28] sm:$0xff] %v29
          $region29: #{custom-call.49} parent=23 // loop_footer
            %s26 = sadd.s32 1, %s22
          $region30: #{custom-call.49} parent=23 // loop_footer_branch
            %21 = sbr.rel target = $region26
          $region31: #{custom-call.49} parent=23 // loop_exit
            _
        $region24: #{custom-call.49} parent=8 // pred_fallthru
          _
        // Predicated region
        $region32: #{custom-call.49} parent=8 // pred_check
          _
        $region33: #{custom-call.49} parent=8 // pred_check_branch
          %32 = sbr.rel target = $region35
        $region34: #{custom-call.49} parent=8 // pred_region
          _
        $region35: #{custom-call.49} parent=8 // pred_fallthru
          _
      $region9: #{custom-call.49} parent=4 // pred_fallthru
        _
      // Predicated region
      $region10: #{custom-call.49} parent=4 // pred_check
        _
      $region11: #{custom-call.49} parent=4 // pred_check_branch
        %7 = sbr.rel target = $region13
      $region12: #{custom-call.49} parent=4 // pred_region
        loop: start=0, step=1, limit=1
        $region14: #{custom-call.49} parent=12 // loop_pre_header
          _
        $region15: #{custom-call.49} parent=12 // loop_header
          %s10 = sphi 0, %s14
          %p11 = scmp.ge.s32.totalorder %s10, 1
          %s15 = sphi %s0, %s0
          %s16 = sphi [#allocation0], [#allocation0]
        $region16: #{custom-call.49} parent=12 // loop_header_branch
          %13 = sbr.rel (%p11) target = $region20
        $region17: #{custom-call.49} parent=12 // loop_body
          %v17 = vld [vmem:[%s15] sm:$0xff]
          %18 = vst [vmem:[%s16] sm:$0xff] %v17
        $region18: #{custom-call.49} parent=12 // loop_footer
          %s14 = sadd.s32 1, %s10
        $region19: #{custom-call.49} parent=12 // loop_footer_branch
          %9 = sbr.rel target = $region15
        $region20: #{custom-call.49} parent=12 // loop_exit
          _
      $region13: #{custom-call.49} parent=4 // pred_fallthru
        _
    $region5: #{custom-call.49} parent=1 // pred_fallthru
      _
    %33 = vnop
    %34 = vst [vmem:[#allocation1] sm:$0xff] 0.0
    %vm35 = vcmask 7168
    %v36 = vld [vmem:[#allocation1] ss:$0 sm:$0xff]
    %v37 = vld [vmem:[#allocation0] ss:$0 sm:$0xff]
    %v38 = vmul.f32 %v36, %v36
    %39 = vadd.xlane.f32.xlu0 %v38
    %v40 = vpop.xlane.xlu0 %39
    %v41 = vsub.f32 %v37, %v40
    %v42 = vrsqrt.pop %v41
    %v43 = vld [vmem:[#allocation0] sm:$0xff]
    %v44 = vld [vmem:[#allocation1] sm:$0xff]
    %v45 = vmul.f32 %v44, %v36
    %46 = vadd.xlane.f32.xlu0 %v45
    %v47 = vpop.xlane.xlu0 %46
    %v48 = vsub.f32 %v43, %v47
    %v49 = vmul.f32 %v48, %v42
    %v50 = vsel %vm35, %v49, 0.0
    %v51 = vadd.f32 %v44, %v50
    %52 = vst [vmem:[#allocation1] sm:$0xff] %v51
    %vm53 = vcmask 15368
    %s54 = scalar_lea.vmem [#allocation1], 1
    %v55 = vld [vmem:[%s54] ss:$0 sm:$0xff]
    %s56 = scalar_lea.vmem [#allocation0], 1
    %v57 = vld [vmem:[%s56] ss:$0 sm:$0xff]
    %v58 = vmul.f32 %v55, %v55
    %59 = vadd.xlane.f32.xlu0 %v58
    %v60 = vpop.xlane.xlu0 %59
    %v61 = vsub.f32 %v57, %v60
    %v62 = vrsqrt.pop %v61
    %v63 = vld [vmem:[#allocation0] sm:$0xff]
    %v64 = vld [vmem:[#allocation1] sm:$0xff]
    %v65 = vmul.f32 %v64, %v55
    %66 = vadd.xlane.f32.xlu0 %v65
    %v67 = vpop.xlane.xlu0 %66
    %v68 = vsub.f32 %v63, %v67
    %v69 = vmul.f32 %v68, %v62
    %vm70 = vcmask 1047553
    %vm71 = vmand %vm53, %vm70
    %v72 = vsel %vm71, %v69, 0.0
    %v73 = vadd.f32 %v64, %v72
    %74 = vst [vmem:[#allocation1] sm:$0xff] %v73
    %vm75 = vcmask 23568
    %s76 = scalar_lea.vmem [#allocation1], 2
    %v77 = vld [vmem:[%s76] ss:$0 sm:$0xff]
    %s78 = scalar_lea.vmem [#allocation0], 2
    %v79 = vld [vmem:[%s78] ss:$0 sm:$0xff]
    %v80 = vmul.f32 %v77, %v77
    %81 = vadd.xlane.f32.xlu0 %v80
    %v82 = vpop.xlane.xlu0 %81
    %v83 = vsub.f32 %v79, %v82
    %v84 = vrsqrt.pop %v83
    %v85 = vld [vmem:[#allocation0] sm:$0xff]
    %v86 = vld [vmem:[#allocation1] sm:$0xff]
    %v87 = vmul.f32 %v86, %v77
    %88 = vadd.xlane.f32.xlu0 %v87
    %v89 = vpop.xlane.xlu0 %88
    %v90 = vsub.f32 %v85, %v89
    %v91 = vmul.f32 %v90, %v84
    %vm92 = vcmask 1047554
    %vm93 = vmand %vm75, %vm92
    %v94 = vsel %vm93, %v91, 0.0
    %v95 = vadd.f32 %v86, %v94
    %96 = vst [vmem:[#allocation1] sm:$0xff] %v95
    %vm97 = vcmask 31768
    %s98 = scalar_lea.vmem [#allocation1], 3
    %v99 = vld [vmem:[%s98] ss:$0 sm:$0xff]
    %s100 = scalar_lea.vmem [#allocation0], 3
    %v101 = vld [vmem:[%s100] ss:$0 sm:$0xff]
    %v102 = vmul.f32 %v99, %v99
    %103 = vadd.xlane.f32.xlu0 %v102
    %v104 = vpop.xlane.xlu0 %103
    %v105 = vsub.f32 %v101, %v104
    %v106 = vrsqrt.pop %v105
    %v107 = vld [vmem:[#allocation0] sm:$0xff]
    %v108 = vld [vmem:[#allocation1] sm:$0xff]
    %v109 = vmul.f32 %v108, %v99
    %110 = vadd.xlane.f32.xlu0 %v109
    %v111 = vpop.xlane.xlu0 %110
    %v112 = vsub.f32 %v107, %v111
    %v113 = vmul.f32 %v112, %v106
    %vm114 = vcmask 1047555
    %vm115 = vmand %vm97, %vm114
    %v116 = vsel %vm115, %v113, 0.0
    %v117 = vadd.f32 %v108, %v116
    %118 = vst [vmem:[#allocation1] sm:$0xff] %v117
    %vm119 = vcmask 39968
    %s120 = scalar_lea.vmem [#allocation1], 4
    %v121 = vld [vmem:[%s120] ss:$0 sm:$0xff]
    %s122 = scalar_lea.vmem [#allocation0], 4
    %v123 = vld [vmem:[%s122] ss:$0 sm:$0xff]
    %v124 = vmul.f32 %v121, %v121
    %125 = vadd.xlane.f32.xlu0 %v124
    %v126 = vpop.xlane.xlu0 %125
    %v127 = vsub.f32 %v123, %v126
    %v128 = vrsqrt.pop %v127
    %v129 = vld [vmem:[#allocation0] sm:$0xff]
    %v130 = vld [vmem:[#allocation1] sm:$0xff]
    %v131 = vmul.f32 %v130, %v121
    %132 = vadd.xlane.f32.xlu0 %v131
    %v133 = vpop.xlane.xlu0 %132
    %v134 = vsub.f32 %v129, %v133
    %v135 = vmul.f32 %v134, %v128
    %vm136 = vcmask 1047556
    %vm137 = vmand %vm119, %vm136
    %v138 = vsel %vm137, %v135, 0.0
    %v139 = vadd.f32 %v130, %v138
    %140 = vst [vmem:[#allocation1] sm:$0xff] %v139
    %vm141 = vcmask 48168
    %s142 = scalar_lea.vmem [#allocation1], 5
    %v143 = vld [vmem:[%s142] ss:$0 sm:$0xff]
    %s144 = scalar_lea.vmem [#allocation0], 5
    %v145 = vld [vmem:[%s144] ss:$0 sm:$0xff]
    %v146 = vmul.f32 %v143, %v143
    %147 = vadd.xlane.f32.xlu0 %v146
    %v148 = vpop.xlane.xlu0 %147
    %v149 = vsub.f32 %v145, %v148
    %v150 = vrsqrt.pop %v149
    %v151 = vld [vmem:[#allocation0] sm:$0xff]
    %v152 = vld [vmem:[#allocation1] sm:$0xff]
    %v153 = vmul.f32 %v152, %v143
    %154 = vadd.xlane.f32.xlu0 %v153
    %v155 = vpop.xlane.xlu0 %154
    %v156 = vsub.f32 %v151, %v155
    %v157 = vmul.f32 %v156, %v150
    %vm158 = vcmask 1047557
    %vm159 = vmand %vm141, %vm158
    %v160 = vsel %vm159, %v157, 0.0
    %v161 = vadd.f32 %v152, %v160
    %162 = vst [vmem:[#allocation1] sm:$0xff] %v161
    // Predicated region
    $region36: #{custom-call.49} parent=1 // pred_check
      _
    $region37: #{custom-call.49} parent=1 // pred_check_branch
      %164 = sbr.rel (0) target = $region39
    $region38: #{custom-call.49} parent=1 // pred_region
      // Predicated region
      $region40: #{custom-call.49} parent=38 // pred_check
        _
      $region41: #{custom-call.49} parent=38 // pred_check_branch
        %166 = sbr.rel (0) target = $region43
      $region42: #{custom-call.49} parent=38 // pred_region
        // Predicated region
        $region55: #{custom-call.49} parent=42 // pred_check
          _
        $region56: #{custom-call.49} parent=42 // pred_check_branch
          %181 = sbr.rel (0) target = $region58
        $region57: #{custom-call.49} parent=42 // pred_region
          loop: start=0, step=1, limit=1
          $region59: #{custom-call.49} parent=57 // loop_pre_header
            _
          $region60: #{custom-call.49} parent=57 // loop_header
            %s183 = sphi 0, %s187
            %p184 = scmp.ge.s32.totalorder %s183, 1
            %s188 = sphi [#allocation1], [#allocation1]
            %s189 = sphi %s1, %s1
          $region61: #{custom-call.49} parent=57 // loop_header_branch
            %186 = sbr.rel (%p184) target = $region65
          $region62: #{custom-call.49} parent=57 // loop_body
            %v190 = vld [vmem:[%s188] sm:$0xff]
            %191 = vst [vmem:[%s189] sm:$0xff] %v190
          $region63: #{custom-call.49} parent=57 // loop_footer
            %s187 = sadd.s32 1, %s183
          $region64: #{custom-call.49} parent=57 // loop_footer_branch
            %182 = sbr.rel target = $region60
          $region65: #{custom-call.49} parent=57 // loop_exit
            _
        $region58: #{custom-call.49} parent=42 // pred_fallthru
          _
        // Predicated region
        $region66: #{custom-call.49} parent=42 // pred_check
          _
        $region67: #{custom-call.49} parent=42 // pred_check_branch
          %193 = sbr.rel target = $region69
        $region68: #{custom-call.49} parent=42 // pred_region
          _
        $region69: #{custom-call.49} parent=42 // pred_fallthru
          _
      $region43: #{custom-call.49} parent=38 // pred_fallthru
        _
      // Predicated region
      $region44: #{custom-call.49} parent=38 // pred_check
        _
      $region45: #{custom-call.49} parent=38 // pred_check_branch
        %168 = sbr.rel target = $region47
      $region46: #{custom-call.49} parent=38 // pred_region
        loop: start=0, step=1, limit=1
        $region48: #{custom-call.49} parent=46 // loop_pre_header
          _
        $region49: #{custom-call.49} parent=46 // loop_header
          %s171 = sphi 0, %s175
          %p172 = scmp.ge.s32.totalorder %s171, 1
          %s176 = sphi [#allocation1], [#allocation1]
          %s177 = sphi %s1, %s1
        $region50: #{custom-call.49} parent=46 // loop_header_branch
          %174 = sbr.rel (%p172) target = $region54
        $region51: #{custom-call.49} parent=46 // loop_body
          %v178 = vld [vmem:[%s176] sm:$0xff]
          %179 = vst [vmem:[%s177] sm:$0xff] %v178
        $region52: #{custom-call.49} parent=46 // loop_footer
          %s175 = sadd.s32 1, %s171
        $region53: #{custom-call.49} parent=46 // loop_footer_branch
          %170 = sbr.rel target = $region49
        $region54: #{custom-call.49} parent=46 // loop_exit
          _
      $region47: #{custom-call.49} parent=38 // pred_fallthru
        _
    $region39: #{custom-call.49} parent=1 // pred_fallthru
      _
    %194 = vnop

// kernel: custom-call.50
$region0: #{custom-call.50}
  %s0 = inlined_call_operand.vmem [shape: f32[1,6,6], index: 0, kind: input, shape index: {}]
  %s1 = inlined_call_operand.vmem [shape: f32[1,6,6], index: 1, kind: output, shape index: {}]
  $region1: #{custom-call.50} parent=0
    #allocation0 [shape = 'u8[4096]{0}', space=vmem, size = 0x1000, scoped, tag = 'operand span for operand 0']
    #allocation1 [shape = 'u8[4096]{0}', space=vmem, size = 0x1000, scoped, tag = 'operand span for operand 1']
    #allocation2 [shape = 'f32[6,6]{1,0}', space=vmem, size = 0x1000, scoped, tag = 'rescaled input a']
    // Predicated region
    $region2: #{custom-call.50} parent=1 // pred_check
      _
    $region3: #{custom-call.50} parent=1 // pred_check_branch
      %3 = sbr.rel (0) target = $region5
    $region4: #{custom-call.50} parent=1 // pred_region
      // Predicated region
      $region6: #{custom-call.50} parent=4 // pred_check
        _
      $region7: #{custom-call.50} parent=4 // pred_check_branch
        %5 = sbr.rel (0) target = $region9
      $region8: #{custom-call.50} parent=4 // pred_region
        // Predicated region
        $region21: #{custom-call.50} parent=8 // pred_check
          _
        $region22: #{custom-call.50} parent=8 // pred_check_branch
          %20 = sbr.rel (0) target = $region24
        $region23: #{custom-call.50} parent=8 // pred_region
          loop: start=0, step=1, limit=1
          $region25: #{custom-call.50} parent=23 // loop_pre_header
            _
          $region26: #{custom-call.50} parent=23 // loop_header
            %s22 = sphi 0, %s26
            %p23 = scmp.ge.s32.totalorder %s22, 1
            %s27 = sphi %s0, %s0
            %s28 = sphi [#allocation0], [#allocation0]
          $region27: #{custom-call.50} parent=23 // loop_header_branch
            %25 = sbr.rel (%p23) target = $region31
          $region28: #{custom-call.50} parent=23 // loop_body
            %v29 = vld [vmem:[%s27] sm:$0xff]
            %30 = vst [vmem:[%s28] sm:$0xff] %v29
          $region29: #{custom-call.50} parent=23 // loop_footer
            %s26 = sadd.s32 1, %s22
          $region30: #{custom-call.50} parent=23 // loop_footer_branch
            %21 = sbr.rel target = $region26
          $region31: #{custom-call.50} parent=23 // loop_exit
            _
        $region24: #{custom-call.50} parent=8 // pred_fallthru
          _
        // Predicated region
        $region32: #{custom-call.50} parent=8 // pred_check
          _
        $region33: #{custom-call.50} parent=8 // pred_check_branch
          %32 = sbr.rel target = $region35
        $region34: #{custom-call.50} parent=8 // pred_region
          _
        $region35: #{custom-call.50} parent=8 // pred_fallthru
          _
      $region9: #{custom-call.50} parent=4 // pred_fallthru
        _
      // Predicated region
      $region10: #{custom-call.50} parent=4 // pred_check
        _
      $region11: #{custom-call.50} parent=4 // pred_check_branch
        %7 = sbr.rel target = $region13
      $region12: #{custom-call.50} parent=4 // pred_region
        loop: start=0, step=1, limit=1
        $region14: #{custom-call.50} parent=12 // loop_pre_header
          _
        $region15: #{custom-call.50} parent=12 // loop_header
          %s10 = sphi 0, %s14
          %p11 = scmp.ge.s32.totalorder %s10, 1
          %s15 = sphi %s0, %s0
          %s16 = sphi [#allocation0], [#allocation0]
        $region16: #{custom-call.50} parent=12 // loop_header_branch
          %13 = sbr.rel (%p11) target = $region20
        $region17: #{custom-call.50} parent=12 // loop_body
          %v17 = vld [vmem:[%s15] sm:$0xff]
          %18 = vst [vmem:[%s16] sm:$0xff] %v17
        $region18: #{custom-call.50} parent=12 // loop_footer
          %s14 = sadd.s32 1, %s10
        $region19: #{custom-call.50} parent=12 // loop_footer_branch
          %9 = sbr.rel target = $region15
        $region20: #{custom-call.50} parent=12 // loop_exit
          _
      $region13: #{custom-call.50} parent=4 // pred_fallthru
        _
    $region5: #{custom-call.50} parent=1 // pred_fallthru
      _
    %33 = vnop
    %v34 = vlaneseq
    %v35 = vand.u32 %v34, 127
    %vm36 = vcmp.lt.s32.totalorder %v35, 6
    %v37 = vlaneseq
    %v38 = vshrl.u32 %v37, 7
    %vm40 = vcmp.eq.s32.totalorder %v38, %v35
    %v41 = vld [vmem:[#allocation0] sm:$0xff]
    %v42 = vsel %vm40, %v41, 0.0
    %43 = vadd.xlane.f32.xlu0 %v42
    %v44 = vpop.xlane.xlu0 %43
    %vm45 = vcmp.ge.s32.totalorder %v38, %v35
    %vm46 = vmand %vm45, %vm36
    %v47 = vsel %vm46, %v41, 0.0
    %v48 = vrcp.pop %v44
    %v49 = vmul.f32 %v47, %v48
    %50 = vst [vmem:[#allocation2] sm:$0xff] %v49
    %v51 = vlaneseq
    %v52 = vand.u32 %v51, 127
    %v53 = vlaneseq
    %v54 = vshrl.u32 %v53, 7
    %vm56 = vcmp.eq.s32.totalorder %v52, %v54
    %v57 = vlaneseq
    %v58 = vand.u32 %v57, 127
    %vm59 = vcmp.eq.s32.totalorder %v58, 0
    %v60 = vsel %vm59, 1.0, -1.0
    %v61 = vsel %vm56, %v60, 0.0
    %s62 = scalar_lea.vmem [#allocation2], 1
    %v63 = vld [vmem:[%s62] ss:$0 sm:$0xff]
    %v64 = vxor.u32 %v63, 2147483648
    %v65 = vlaneseq
    %v66 = vand.u32 %v65, 127
    %vm67 = vcmp.eq.s32.totalorder %v66, 1
    %v68 = vmul.f32 %v64, %v61
    %69 = vadd.xlane.f32.xlu0 %v68
    %v70 = vpop.xlane.xlu0 %69
    %v71 = vsel %vm67, %v70, %v61
    %s72 = scalar_lea.vmem [#allocation2], 2
    %v73 = vld [vmem:[%s72] ss:$0 sm:$0xff]
    %v74 = vxor.u32 %v73, 2147483648
    %v75 = vlaneseq
    %v76 = vand.u32 %v75, 127
    %vm77 = vcmp.eq.s32.totalorder %v76, 2
    %v78 = vmul.f32 %v74, %v71
    %79 = vadd.xlane.f32.xlu0 %v78
    %v80 = vpop.xlane.xlu0 %79
    %v81 = vsel %vm77, %v80, %v71
    %s82 = scalar_lea.vmem [#allocation2], 3
    %v83 = vld [vmem:[%s82] ss:$0 sm:$0xff]
    %v84 = vxor.u32 %v83, 2147483648
    %v85 = vlaneseq
    %v86 = vand.u32 %v85, 127
    %vm87 = vcmp.eq.s32.totalorder %v86, 3
    %v88 = vmul.f32 %v84, %v81
    %89 = vadd.xlane.f32.xlu0 %v88
    %v90 = vpop.xlane.xlu0 %89
    %v91 = vsel %vm87, %v90, %v81
    %s92 = scalar_lea.vmem [#allocation2], 4
    %v93 = vld [vmem:[%s92] ss:$0 sm:$0xff]
    %v94 = vxor.u32 %v93, 2147483648
    %v95 = vlaneseq
    %v96 = vand.u32 %v95, 127
    %vm97 = vcmp.eq.s32.totalorder %v96, 4
    %v98 = vmul.f32 %v94, %v91
    %99 = vadd.xlane.f32.xlu0 %v98
    %v100 = vpop.xlane.xlu0 %99
    %v101 = vsel %vm97, %v100, %v91
    %s102 = scalar_lea.vmem [#allocation2], 5
    %v103 = vld [vmem:[%s102] ss:$0 sm:$0xff]
    %v104 = vxor.u32 %v103, 2147483648
    %v105 = vlaneseq
    %v106 = vand.u32 %v105, 127
    %vm107 = vcmp.eq.s32.totalorder %v106, 5
    %v108 = vmul.f32 %v104, %v101
    %109 = vadd.xlane.f32.xlu0 %v108
    %v110 = vpop.xlane.xlu0 %109
    %v111 = vsel %vm107, %v110, %v101
    %v112 = vrcp.pop %v44
    %v113 = vmul.f32 %v111, %v112
    %vm114 = vweird.f32 %v44
    %v115 = vsel %vm114, %v111, %v113
    %116 = vst [vmem:[#allocation1] sm:$0xff] %v115
    // Predicated region
    $region36: #{custom-call.50} parent=1 // pred_check
      _
    $region37: #{custom-call.50} parent=1 // pred_check_branch
      %118 = sbr.rel (0) target = $region39
    $region38: #{custom-call.50} parent=1 // pred_region
      // Predicated region
      $region40: #{custom-call.50} parent=38 // pred_check
        _
      $region41: #{custom-call.50} parent=38 // pred_check_branch
        %120 = sbr.rel (0) target = $region43
      $region42: #{custom-call.50} parent=38 // pred_region
        // Predicated region
        $region55: #{custom-call.50} parent=42 // pred_check
          _
        $region56: #{custom-call.50} parent=42 // pred_check_branch
          %135 = sbr.rel (0) target = $region58
        $region57: #{custom-call.50} parent=42 // pred_region
          loop: start=0, step=1, limit=1
          $region59: #{custom-call.50} parent=57 // loop_pre_header
            _
          $region60: #{custom-call.50} parent=57 // loop_header
            %s137 = sphi 0, %s141
            %p138 = scmp.ge.s32.totalorder %s137, 1
            %s142 = sphi [#allocation1], [#allocation1]
            %s143 = sphi %s1, %s1
          $region61: #{custom-call.50} parent=57 // loop_header_branch
            %140 = sbr.rel (%p138) target = $region65
          $region62: #{custom-call.50} parent=57 // loop_body
            %v144 = vld [vmem:[%s142] sm:$0xff]
            %145 = vst [vmem:[%s143] sm:$0xff] %v144
          $region63: #{custom-call.50} parent=57 // loop_footer
            %s141 = sadd.s32 1, %s137
          $region64: #{custom-call.50} parent=57 // loop_footer_branch
            %136 = sbr.rel target = $region60
          $region65: #{custom-call.50} parent=57 // loop_exit
            _
        $region58: #{custom-call.50} parent=42 // pred_fallthru
          _
        // Predicated region
        $region66: #{custom-call.50} parent=42 // pred_check
          _
        $region67: #{custom-call.50} parent=42 // pred_check_branch
          %147 = sbr.rel target = $region69
        $region68: #{custom-call.50} parent=42 // pred_region
          _
        $region69: #{custom-call.50} parent=42 // pred_fallthru
          _
      $region43: #{custom-call.50} parent=38 // pred_fallthru
        _
      // Predicated region
      $region44: #{custom-call.50} parent=38 // pred_check
        _
      $region45: #{custom-call.50} parent=38 // pred_check_branch
        %122 = sbr.rel target = $region47
      $region46: #{custom-call.50} parent=38 // pred_region
        loop: start=0, step=1, limit=1
        $region48: #{custom-call.50} parent=46 // loop_pre_header
          _
        $region49: #{custom-call.50} parent=46 // loop_header
          %s125 = sphi 0, %s129
          %p126 = scmp.ge.s32.totalorder %s125, 1
          %s130 = sphi [#allocation1], [#allocation1]
          %s131 = sphi %s1, %s1
        $region50: #{custom-call.50} parent=46 // loop_header_branch
          %128 = sbr.rel (%p126) target = $region54
        $region51: #{custom-call.50} parent=46 // loop_body
          %v132 = vld [vmem:[%s130] sm:$0xff]
          %133 = vst [vmem:[%s131] sm:$0xff] %v132
        $region52: #{custom-call.50} parent=46 // loop_footer
          %s129 = sadd.s32 1, %s125
        $region53: #{custom-call.50} parent=46 // loop_footer_branch
          %124 = sbr.rel target = $region49
        $region54: #{custom-call.50} parent=46 // loop_exit
          _
      $region47: #{custom-call.50} parent=38 // pred_fallthru
        _
    $region39: #{custom-call.50} parent=1 // pred_fallthru
      _
    %148 = vnop

// kernel: metaopt_head_forward.1
$region0: #{metaopt_head_forward.1}
  #allocation0 [shape = 'u32[]', space=smem, size = 0x4, offset = 0x4, fixed_abs, tag = 'smem constant byte address 0x4 - core index']
  #allocation1 [shape = 'u32[144,128]{1,0:T(1,128)}', space=vmem, size = 0x12000, scoped, tag = 'internal scratch']
  #allocation2 [shape = 'f32[12,6]{1,0:T(8,128)}', space=vmem, size = 0x2000, scoped, tag = 'scratch operand']
  #allocation3 [shape = 'f32[12,1]{1,0:T(8,128)}', space=vmem, size = 0x2000, scoped, tag = 'scratch operand']
  #allocation4 [shape = 'f32[1,6]{1,0:T(1,128)}', space=vmem, size = 0x200, scoped, tag = 'scratch operand']
  %s0 = inlined_call_operand.vmem [shape: f32[6,4,256], index: 0, kind: input, shape index: {}]
  %s1 = inlined_call_operand.vmem [shape: f32[6,4,256], index: 1, kind: input, shape index: {}]
  %s2 = inlined_call_operand.vmem [shape: f32[6,6], index: 2, kind: output, shape index: {0}]
  %s3 = inlined_call_operand.vmem [shape: f32[6,6], index: 3, kind: output, shape index: {1}]
  %4 = xla_tuple %s2, %s3
  %s5 = sld [smem:[#allocation0]]
  $region34: #{metaopt_head_forward.1} parent=0
    _
  %s7 = ssub.s32 1, %s5
  %s8 = scalar_select 0, %s7, %s5
  // Predicated region
  $region2: #{metaopt_head_forward.1} parent=0 // pred_check
    _
  $region3: #{metaopt_head_forward.1} parent=0 // pred_check_branch
    %10 = sbr.rel (0) target = $region5
  $region4: #{metaopt_head_forward.1} parent=0 // pred_region
    _
  $region5: #{metaopt_head_forward.1} parent=0 // pred_fallthru
    _
  // Predicated region
  $region6: #{metaopt_head_forward.1} parent=0 // pred_check
    _
  $region7: #{metaopt_head_forward.1} parent=0 // pred_check_branch
    %12 = sbr.rel (0) target = $region9
  $region8: #{metaopt_head_forward.1} parent=0 // pred_region
    _
  $region9: #{metaopt_head_forward.1} parent=0 // pred_fallthru
    _
  %p13 = scmp.eq.s32.totalorder 0, 0
  // Predicated region
  $region10: #{metaopt_head_forward.1} parent=0 // pred_check
    %p14 = pneg %p13
  $region11: #{metaopt_head_forward.1} parent=0 // pred_check_branch
    %16 = sbr.rel (%p14) target = $region13
  $region12: #{metaopt_head_forward.1} parent=0 // pred_region
    %vm17 = vcmask 48128
    %18 = vst.msk [vmem:[#allocation2] sm:$0xff] %vm17, 0.0
    %vm19 = vcmask 44032
    %20 = vst.msk [vmem:[#allocation2 + $0x8] sm:$0xf] %vm19, 0.0
    %vm21 = vcmask 7168
    %22 = vst.msk [vmem:[#allocation3] sm:$0xff] %vm21, 0.0
    %vm23 = vcmask 3072
    %24 = vst.msk [vmem:[#allocation3 + $0x8] sm:$0xf] %vm23, 0.0
    %vm25 = vcmask 40960
    %26 = vst.msk [vmem:[#allocation4] sm:$0x1] %vm25, 0.0
  $region13: #{metaopt_head_forward.1} parent=0 // pred_fallthru
    _
  %v27 = vld [vmem:[%s0] sm:$0xff]
  %v28 = vld [vmem:[%s0 + $0x8] sm:$0xff]
  %v29 = vld [vmem:[%s0 + $0x10] sm:$0xff]
  %v30 = vld [vmem:[%s0 + $0x18] sm:$0xff]
  %v31 = vld [vmem:[%s0 + $0x20] sm:$0xff]
  %v32 = vld [vmem:[%s0 + $0x28] sm:$0xff]
  %v39 = vcombine.high %v27, %v27
  %v40 = vcombine.high %v28, %v28
  %v41 = vcombine.high %v29, %v29
  %v42 = vcombine.high %v30, %v30
  %v43 = vcombine.high %v31, %v31
  %v44 = vcombine.high %v32, %v32
  %vm51 = vcmask 1043456
  %v52 = vsel %vm51, %v27, 0.0
  %v53 = vsel %vm51, %v39, 0.0
  %v54 = vadd.f32 %v52, %v53
  %55 = vadd.xlane.f32.xlu0 %v54
  %v56 = vpop.xlane.xlu0 %55
  %v57 = vsel %vm51, %v28, 0.0
  %v58 = vsel %vm51, %v40, 0.0
  %v59 = vadd.f32 %v57, %v58
  %60 = vadd.xlane.f32.xlu0 %v59
  %v61 = vpop.xlane.xlu0 %60
  %v62 = vsel %vm51, %v29, 0.0
  %v63 = vsel %vm51, %v41, 0.0
  %v64 = vadd.f32 %v62, %v63
  %65 = vadd.xlane.f32.xlu0 %v64
  %v66 = vpop.xlane.xlu0 %65
  %v67 = vsel %vm51, %v30, 0.0
  %v68 = vsel %vm51, %v42, 0.0
  %v69 = vadd.f32 %v67, %v68
  %70 = vadd.xlane.f32.xlu0 %v69
  %v71 = vpop.xlane.xlu0 %70
  %v72 = vsel %vm51, %v31, 0.0
  %v73 = vsel %vm51, %v43, 0.0
  %v74 = vadd.f32 %v72, %v73
  %75 = vadd.xlane.f32.xlu0 %v74
  %v76 = vpop.xlane.xlu0 %75
  %v77 = vsel %vm51, %v32, 0.0
  %v78 = vsel %vm51, %v44, 0.0
  %v79 = vadd.f32 %v77, %v78
  %80 = vadd.xlane.f32.xlu0 %v79
  %v81 = vpop.xlane.xlu0 %80
  %v82 = vld [vmem:[%s1] sm:$0xff]
  %v83 = vld [vmem:[%s1 + $0x8] sm:$0xff]
  %v84 = vld [vmem:[%s1 + $0x10] sm:$0xff]
  %v85 = vld [vmem:[%s1 + $0x18] sm:$0xff]
  %v86 = vld [vmem:[%s1 + $0x20] sm:$0xff]
  %v87 = vld [vmem:[%s1 + $0x28] sm:$0xff]
  %v94 = vcombine.high %v82, %v82
  %v95 = vcombine.high %v83, %v83
  %v96 = vcombine.high %v84, %v84
  %v97 = vcombine.high %v85, %v85
  %v98 = vcombine.high %v86, %v86
  %v99 = vcombine.high %v87, %v87
  %v106 = vsel %vm51, %v82, 0.0
  %v107 = vsel %vm51, %v94, 0.0
  %v108 = vadd.f32 %v106, %v107
  %109 = vadd.xlane.f32.xlu0 %v108
  %v110 = vpop.xlane.xlu0 %109
  %v111 = vsel %vm51, %v83, 0.0
  %v112 = vsel %vm51, %v95, 0.0
  %v113 = vadd.f32 %v111, %v112
  %114 = vadd.xlane.f32.xlu0 %v113
  %v115 = vpop.xlane.xlu0 %114
  %v116 = vsel %vm51, %v84, 0.0
  %v117 = vsel %vm51, %v96, 0.0
  %v118 = vadd.f32 %v116, %v117
  %119 = vadd.xlane.f32.xlu0 %v118
  %v120 = vpop.xlane.xlu0 %119
  %v121 = vsel %vm51, %v85, 0.0
  %v122 = vsel %vm51, %v97, 0.0
  %v123 = vadd.f32 %v121, %v122
  %124 = vadd.xlane.f32.xlu0 %v123
  %v125 = vpop.xlane.xlu0 %124
  %v126 = vsel %vm51, %v86, 0.0
  %v127 = vsel %vm51, %v98, 0.0
  %v128 = vadd.f32 %v126, %v127
  %129 = vadd.xlane.f32.xlu0 %v128
  %v130 = vpop.xlane.xlu0 %129
  %v131 = vsel %vm51, %v87, 0.0
  %v132 = vsel %vm51, %v99, 0.0
  %v133 = vadd.f32 %v131, %v132
  %134 = vadd.xlane.f32.xlu0 %v133
  %v135 = vpop.xlane.xlu0 %134
  %v142 = vlaneseq
  %v143 = vand.u32 %v142, 127
  %v144 = vlaneseq
  %v145 = vshrl.u32 %v144, 7
  %v146 = vsub.s32 %v143, %v145
  %v147 = vrot.slane %v110, %v146
  %v148 = vlaneseq
  %v149 = vshrl.u32 %v148, 7
  %v150 = vsub.s32 %v143, %v149
  %v151 = vrot.slane %v115, %v150
  %v152 = vlaneseq
  %v153 = vshrl.u32 %v152, 7
  %v154 = vsub.s32 %v143, %v153
  %v155 = vrot.slane %v120, %v154
  %v156 = vlaneseq
  %v157 = vshrl.u32 %v156, 7
  %v158 = vsub.s32 %v143, %v157
  %v159 = vrot.slane %v125, %v158
  %v160 = vlaneseq
  %v161 = vshrl.u32 %v160, 7
  %v162 = vsub.s32 %v143, %v161
  %v163 = vrot.slane %v130, %v162
  %v164 = vlaneseq
  %v165 = vshrl.u32 %v164, 7
  %v166 = vsub.s32 %v143, %v165
  %v167 = vrot.slane %v135, %v166
  %vm168 = vcmask 1041409
  %v169 = vsel %vm168, %v151, %v147
  %vm170 = vcmask 1042434
  %v171 = vsel %vm170, %v155, %v169
  %vm172 = vcmask 1043459
  %v173 = vsel %vm172, %v159, %v171
  %vm174 = vcmask 1044484
  %v175 = vsel %vm174, %v163, %v173
  %vm176 = vcmask 1045509
  %v177 = vsel %vm176, %v167, %v175
  %v185 = vlaneseq
  %v186 = vshrl.u32 %v185, 7
  %v187 = vsub.s32 %v143, %v186
  %v188 = vrot.slane %v56, %v187
  %v189 = vlaneseq
  %v190 = vshrl.u32 %v189, 7
  %v191 = vsub.s32 %v143, %v190
  %v192 = vrot.slane %v61, %v191
  %v193 = vlaneseq
  %v194 = vshrl.u32 %v193, 7
  %v195 = vsub.s32 %v143, %v194
  %v196 = vrot.slane %v66, %v195
  %v197 = vlaneseq
  %v198 = vshrl.u32 %v197, 7
  %v199 = vsub.s32 %v143, %v198
  %v200 = vrot.slane %v71, %v199
  %v201 = vlaneseq
  %v202 = vshrl.u32 %v201, 7
  %v203 = vsub.s32 %v143, %v202
  %v204 = vrot.slane %v76, %v203
  %v205 = vlaneseq
  %v206 = vshrl.u32 %v205, 7
  %v207 = vsub.s32 %v143, %v206
  %v208 = vrot.slane %v81, %v207
  %vm209 = vcmask 1047559
  %v210 = vsel %vm209, %v192, %v188
  %v211 = vsel %vm168, %v200, %v196
  %v212 = vsel %vm170, %v204, %v211
  %v213 = vsel %vm172, %v208, %v212
  %vm216 = vcmask 1045504
  %v217 = vsel %vm216, %v177, %v210
  %v218 = vld [vmem:[#allocation2] sm:$0xff]
  %v219 = vld [vmem:[#allocation2 + $0x8] sm:$0xf]
  %v220 = vsel %vm168, %v192, %v188
  %v221 = vsel %vm170, %v196, %v220
  %v222 = vsel %vm172, %v200, %v221
  %v223 = vsel %vm174, %v204, %v222
  %v224 = vsel %vm176, %v208, %v223
  %vm225 = vcmask 31744
  %v227 = vsel %vm225, %v217, 0
  %v229 = vsel %vm225, %v213, 0
  %v231 = vsel %vm225, %v224, 0
  %233 = vmatprep.subr.mxu0 0.0
  %234 = vmatpush1.xpose.msra.mxu0 %v231
  %235 = vmatprep.subr.mxu0 0.0
  %236 = vmatpush1.xpose.msra.mxu0 0.0
  %237 = vmatprep.subr.mxu0 0.0
  %238 = vmatpush1.xpose.msra.mxu0 0.0
  %239 = vmatprep.subr.mxu0 0.0
  %240 = vmatpush1.xpose.msra.mxu0 0.0
  %241 = vmatprep.subr.mxu0 0.0
  %242 = vmatpush1.xpose.msra.mxu0 0.0
  %243 = vmatprep.subr.mxu0 0.0
  %244 = vmatpush1.xpose.msra.mxu0 0.0
  %245 = vmatprep.subr.mxu0 0.0
  %246 = vmatpush1.xpose.msra.mxu0 0.0
  %247 = vmatprep.subr.mxu0 0.0
  %248 = vmatpush1.xpose.msra.mxu0 0.0
  %249 = vmatprep.subr.mxu0 0.0
  %250 = vmatpush1.xpose.msra.mxu0 0.0
  %251 = vmatprep.subr.mxu0 0.0
  %252 = vmatpush1.xpose.msra.mxu0 0.0
  %253 = vmatprep.subr.mxu0 0.0
  %254 = vmatpush1.xpose.msra.mxu0 0.0
  %255 = vmatprep.subr.mxu0 0.0
  %256 = vmatpush1.xpose.msra.mxu0 0.0
  %257 = vmatprep.subr.mxu0 0.0
  %258 = vmatpush1.xpose.msra.mxu0 0.0
  %259 = vmatprep.subr.mxu0 0.0
  %260 = vmatpush1.xpose.msra.mxu0 0.0
  %261 = vmatprep.subr.mxu0 0.0
  %262 = vmatpush1.xpose.msra.mxu0 0.0
  %263 = vmatprep.subr.mxu0 0.0
  %264 = vmatpush1.xpose.msra.mxu0 0.0
  %265 = vmatprep.subr.mxu0 0.0
  %266 = vmatpush1.xpose.msra.mxu0 0.0
  %267 = vmatprep.subr.mxu0 0.0
  %268 = vmatpush1.xpose.msra.mxu0 0.0
  %269 = vmatprep.subr.mxu0 0.0
  %270 = vmatpush1.xpose.msra.mxu0 0.0
  %271 = vmatprep.subr.mxu0 0.0
  %272 = vmatpush1.xpose.msra.mxu0 0.0
  %273 = vmatprep.subr.mxu0 0.0
  %274 = vmatpush1.xpose.msra.mxu0 0.0
  %275 = vmatprep.subr.mxu0 0.0
  %276 = vmatpush1.xpose.msra.mxu0 0.0
  %277 = vmatprep.subr.mxu0 0.0
  %278 = vmatpush1.xpose.msra.mxu0 0.0
  %279 = vmatprep.subr.mxu0 0.0
  %280 = vmatpush1.xpose.msra.mxu0 0.0
  %281 = vmatprep.subr.mxu0 0.0
  %282 = vmatpush1.xpose.msra.mxu0 0.0
  %283 = vmatprep.subr.mxu0 0.0
  %284 = vmatpush1.xpose.msra.mxu0 0.0
  %285 = vmatprep.subr.mxu0 0.0
  %286 = vmatpush1.xpose.msra.mxu0 0.0
  %287 = vmatprep.subr.mxu0 0.0
  %288 = vmatpush1.xpose.msra.mxu0 0.0
  %289 = vmatprep.subr.mxu0 0.0
  %290 = vmatpush1.xpose.msra.mxu0 0.0
  %291 = vmatprep.subr.mxu0 0.0
  %292 = vmatpush1.xpose.msra.mxu0 0.0
  %293 = vmatprep.subr.mxu0 0.0
  %294 = vmatpush1.xpose.msra.mxu0 0.0
  %295 = vmatprep.subr.mxu0 0.0
  %296 = vmatpush1.xpose.msra.mxu0 0.0
  %297 = vmatprep.mubr.f32.mxu0 0.0
  %298 = vmatmul.mubr.f32.gmra.mrb[0].mxu0 %v227
  %v299 = vpop.f32.mrb[0].mxu0
  %v300 = vadd.f32 0.0, %v299
  %v301 = vpop.f32.mrb[0].mxu0
  %302 = vmatprep.mubr.f32.mxu0 0.0
  %303 = vmatmul.mubr.f32.gmra.mrb[0].mxu0 %v229
  %v304 = vpop.f32.mrb[0].mxu0
  %v305 = vadd.f32 0.0, %v304
  %v306 = vpop.f32.mrb[0].mxu0
  %307 = vdwg.mxu0
  %v308 = vadd.f32 %v218, %v300
  %v309 = vadd.f32 %v219, %v305
  %vm310 = vcmask 48128
  %311 = vst.msk [vmem:[#allocation2] sm:$0xff] %vm310, %v308
  %vm312 = vcmask 44032
  %313 = vst.msk [vmem:[#allocation2 + $0x8] sm:$0xf] %vm312, %v309
  %v314 = vld [vmem:[#allocation3] sm:$0xff]
  %v315 = vld [vmem:[#allocation3 + $0x8] sm:$0xf]
  %v316 = vmul.f32 %v217, %v217
  %v317 = vmul.f32 %v213, %v213
  %v318 = vsel %vm225, %v316, 0.0
  %319 = vadd.xlane.f32.xlu0 %v318
  %v320 = vpop.xlane.xlu0 %319
  %vm321 = vcmask 27648
  %v322 = vsel %vm321, %v317, 0.0
  %323 = vadd.xlane.f32.xlu0 %v322
  %v324 = vpop.xlane.xlu0 %323
  %v325 = vadd.f32 %v314, %v320
  %v326 = vadd.f32 %v315, %v324
  %vm327 = vcmask 7168
  %328 = vst.msk [vmem:[#allocation3] sm:$0xff] %vm327, %v325
  %vm329 = vcmask 3072
  %330 = vst.msk [vmem:[#allocation3 + $0x8] sm:$0xf] %vm329, %v326
  %v331 = vld [vmem:[#allocation4] sm:$0x1]
  %v332 = vmul.f32 %v56, %v56
  %v333 = vmul.f32 %v61, %v61
  %v334 = vmul.f32 %v66, %v66
  %v335 = vmul.f32 %v71, %v71
  %v336 = vmul.f32 %v76, %v76
  %v337 = vmul.f32 %v81, %v81
  %v344 = vlaneseq
  %v345 = vshrl.u32 %v344, 7
  %v346 = vsub.s32 %v143, %v345
  %v347 = vrot.slane %v332, %v346
  %v348 = vlaneseq
  %v349 = vshrl.u32 %v348, 7
  %v350 = vsub.s32 %v143, %v349
  %v351 = vrot.slane %v333, %v350
  %v352 = vlaneseq
  %v353 = vshrl.u32 %v352, 7
  %v354 = vsub.s32 %v143, %v353
  %v355 = vrot.slane %v334, %v354
  %v356 = vlaneseq
  %v357 = vshrl.u32 %v356, 7
  %v358 = vsub.s32 %v143, %v357
  %v359 = vrot.slane %v335, %v358
  %v360 = vlaneseq
  %v361 = vshrl.u32 %v360, 7
  %v362 = vsub.s32 %v143, %v361
  %v363 = vrot.slane %v336, %v362
  %v364 = vlaneseq
  %v365 = vshrl.u32 %v364, 7
  %v366 = vsub.s32 %v143, %v365
  %v367 = vrot.slane %v337, %v366
  %v368 = vsel %vm168, %v351, %v347
  %v369 = vsel %vm170, %v355, %v368
  %v370 = vsel %vm172, %v359, %v369
  %v371 = vsel %vm174, %v363, %v370
  %v372 = vsel %vm176, %v367, %v371
  %v374 = vsel %vm225, 1.0, 0
  %v376 = vsel %vm225, %v372, 0
  %378 = vmatprep.subr.mxu0 0.0
  %379 = vmatpush1.xpose.msra.mxu0 %v376
  %380 = vmatprep.subr.mxu0 0.0
  %381 = vmatpush1.xpose.msra.mxu0 0.0
  %382 = vmatprep.subr.mxu0 0.0
  %383 = vmatpush1.xpose.msra.mxu0 0.0
  %384 = vmatprep.subr.mxu0 0.0
  %385 = vmatpush1.xpose.msra.mxu0 0.0
  %386 = vmatprep.subr.mxu0 0.0
  %387 = vmatpush1.xpose.msra.mxu0 0.0
  %388 = vmatprep.subr.mxu0 0.0
  %389 = vmatpush1.xpose.msra.mxu0 0.0
  %390 = vmatprep.subr.mxu0 0.0
  %391 = vmatpush1.xpose.msra.mxu0 0.0
  %392 = vmatprep.subr.mxu0 0.0
  %393 = vmatpush1.xpose.msra.mxu0 0.0
  %394 = vmatprep.subr.mxu0 0.0
  %395 = vmatpush1.xpose.msra.mxu0 0.0
  %396 = vmatprep.subr.mxu0 0.0
  %397 = vmatpush1.xpose.msra.mxu0 0.0
  %398 = vmatprep.subr.mxu0 0.0
  %399 = vmatpush1.xpose.msra.mxu0 0.0
  %400 = vmatprep.subr.mxu0 0.0
  %401 = vmatpush1.xpose.msra.mxu0 0.0
  %402 = vmatprep.subr.mxu0 0.0
  %403 = vmatpush1.xpose.msra.mxu0 0.0
  %404 = vmatprep.subr.mxu0 0.0
  %405 = vmatpush1.xpose.msra.mxu0 0.0
  %406 = vmatprep.subr.mxu0 0.0
  %407 = vmatpush1.xpose.msra.mxu0 0.0
  %408 = vmatprep.subr.mxu0 0.0
  %409 = vmatpush1.xpose.msra.mxu0 0.0
  %410 = vmatprep.subr.mxu0 0.0
  %411 = vmatpush1.xpose.msra.mxu0 0.0
  %412 = vmatprep.subr.mxu0 0.0
  %413 = vmatpush1.xpose.msra.mxu0 0.0
  %414 = vmatprep.subr.mxu0 0.0
  %415 = vmatpush1.xpose.msra.mxu0 0.0
  %416 = vmatprep.subr.mxu0 0.0
  %417 = vmatpush1.xpose.msra.mxu0 0.0
  %418 = vmatprep.subr.mxu0 0.0
  %419 = vmatpush1.xpose.msra.mxu0 0.0
  %420 = vmatprep.subr.mxu0 0.0
  %421 = vmatpush1.xpose.msra.mxu0 0.0
  %422 = vmatprep.subr.mxu0 0.0
  %423 = vmatpush1.xpose.msra.mxu0 0.0
  %424 = vmatprep.subr.mxu0 0.0
  %425 = vmatpush1.xpose.msra.mxu0 0.0
  %426 = vmatprep.subr.mxu0 0.0
  %427 = vmatpush1.xpose.msra.mxu0 0.0
  %428 = vmatprep.subr.mxu0 0.0
  %429 = vmatpush1.xpose.msra.mxu0 0.0
  %430 = vmatprep.subr.mxu0 0.0
  %431 = vmatpush1.xpose.msra.mxu0 0.0
  %432 = vmatprep.subr.mxu0 0.0
  %433 = vmatpush1.xpose.msra.mxu0 0.0
  %434 = vmatprep.subr.mxu0 0.0
  %435 = vmatpush1.xpose.msra.mxu0 0.0
  %436 = vmatprep.subr.mxu0 0.0
  %437 = vmatpush1.xpose.msra.mxu0 0.0
  %438 = vmatprep.subr.mxu0 0.0
  %439 = vmatpush1.xpose.msra.mxu0 0.0
  %440 = vmatprep.subr.mxu0 0.0
  %441 = vmatpush1.xpose.msra.mxu0 0.0
  %442 = vmatprep.mubr.f32.mxu0 0.0
  %443 = vmatmul.mubr.f32.gmra.mrb[0].mxu0 %v374
  %v444 = vpop.f32.mrb[0].mxu0
  %v445 = vadd.f32 0.0, %v444
  %v446 = vpop.f32.mrb[0].mxu0
  %447 = vdwg.mxu0
  %v448 = vadd.f32 %v331, %v445
  %vm449 = vcmask 40960
  %450 = vst.msk [vmem:[#allocation4] sm:$0x1] %vm449, %v448
  // Predicated region
  $region14: #{metaopt_head_forward.1} parent=0 // pred_check
    %p451 = pneg %p13
  $region15: #{metaopt_head_forward.1} parent=0 // pred_check_branch
    %453 = sbr.rel (%p451) target = $region17
  $region16: #{metaopt_head_forward.1} parent=0 // pred_region
    %v454 = vld [vmem:[#allocation3] sm:$0xff]
    %v455 = vld [vmem:[#allocation3 + $0x8] sm:$0xf]
    %v456 = vmax.f32 %v454, 1e-24
    %v457 = vmax.f32 %v455, 1e-24
    %v458 = vrsqrt.pop %v456
    %v459 = vrsqrt.pop %v457
    %v460 = vld [vmem:[#allocation4] sm:$0x1]
    %v461 = vmax.f32 %v460, 1e-24
    %v462 = vrsqrt.pop %v461
    %v463 = vld [vmem:[#allocation2] sm:$0xff]
    %v464 = vld [vmem:[#allocation2 + $0x8] sm:$0xf]
    %466 = vset.pattern.permute.xlu0 0
    %467 = vperm.xlu0 %466, %v458
    %v468 = vpop.permute.xlu0 %467
    %471 = vset.pattern.permute.xlu0 0
    %472 = vperm.xlu0 %471, %v459
    %v473 = vpop.permute.xlu0 %472
    %v475 = vmul.f32 %v463, %v468
    %v476 = vmul.f32 %v464, %v473
    %v478 = vlaneseq
    %v479 = vshrl.u32 %v478, 7
    %v480 = vsub.s32 0, %v479
    %v481 = vrot.slane %v462, %v480
    %v483 = vmul.f32 %v475, %v481
    %v484 = vmul.f32 %v476, %v481
    %vm485 = vcmask 46080
    %486 = vst.msk [vmem:[%s3] sm:$0x3f] %vm485, %v483
    %vm487 = vcmask 48134
    %488 = vst.msk [vmem:[%s2 - $0x6] sm:$0xc0] %vm487, %v483
    %489 = vst.msk [vmem:[%s2 + $0x2] sm:$0xf] %vm312, %v484
  $region17: #{metaopt_head_forward.1} parent=0 // pred_fallthru
    _
  // Predicated region
  $region18: #{metaopt_head_forward.1} parent=0 // pred_check
    _
  $region19: #{metaopt_head_forward.1} parent=0 // pred_check_branch
    %491 = sbr.rel (0) target = $region21
  $region20: #{metaopt_head_forward.1} parent=0 // pred_region
    _
  $region21: #{metaopt_head_forward.1} parent=0 // pred_fallthru
    _
  // Predicated region
  $region22: #{metaopt_head_forward.1} parent=0 // pred_check
    _
  $region23: #{metaopt_head_forward.1} parent=0 // pred_check_branch
    %493 = sbr.rel (0) target = $region25
  $region24: #{metaopt_head_forward.1} parent=0 // pred_region
    _
  $region25: #{metaopt_head_forward.1} parent=0 // pred_fallthru
    _
  // Predicated region
  $region26: #{metaopt_head_forward.1} parent=0 // pred_check
    _
  $region27: #{metaopt_head_forward.1} parent=0 // pred_check_branch
    %495 = sbr.rel (0) target = $region29
  $region28: #{metaopt_head_forward.1} parent=0 // pred_region
    _
  $region29: #{metaopt_head_forward.1} parent=0 // pred_fallthru
    _
  // Predicated region
  $region30: #{metaopt_head_forward.1} parent=0 // pred_check
    _
  $region31: #{metaopt_head_forward.1} parent=0 // pred_check_branch
    %497 = sbr.rel (0) target = $region33
  $region32: #{metaopt_head_forward.1} parent=0 // pred_region
    _
  $region33: #{metaopt_head_forward.1} parent=0 // pred_fallthru
    _

</llo_original>
